<compile_context>
chip_gen: v6e
topology: v6e:2x2x1
jax: 0.10.0
libtpu: 0.0.40
codegen_flags: <defaults>
</compile_context>

<pallas_src>
import functools

import jax
import jax.numpy as jnp
import numpy as np
from jax import lax
from jax.experimental import pallas as pl
from jax.experimental.pallas import tpu as pltpu


def _round_up(n, m):
    return ((n + m - 1) // m) * m


def _vmem_limit_bytes():
    # Generation-aware scoped-VMEM budget: v7x has 64 MiB/TC, v5e/v6e have 128 MiB.
    try:
        kind = jax.devices()[0].device_kind.lower()
    except Exception:
        kind = ""
    if "v7" in kind:
        return 40 * 1024 * 1024
    return 64 * 1024 * 1024


def rnn_lstm_kernel(x_ref, w_ih_ref, w_hh_ref, b_ref, w_f_ref, b_f_ref,
                    out_ref, h_ref, c_ref, gx_ref, hs_ref):
    # Per grid step (bi, ti):
    #   x_ref:    (Tt, Bt, E)    bf16  time-major embedded input tile
    #   w_ih_ref: (E, 4Hp) bf16, w_hh_ref: (Hp, 4Hp) bf16   gates ordered (i, f, o, g),
    #                                                       each gate block padded to Hp
    #   b_ref:    (1, 4Hp) f32   b_ih + b_hh (same gate order/padding)
    #   w_f_ref:  (Hp, Vp) bf16, b_f_ref: (1, Vp) f32       final Linear (zero-padded)
    #   out_ref:  (Bt, Tt, Vp) f32   batch-first logits tile (lane-dense V stores)
    #   h_ref/c_ref: (Bt, Hp) f32    recurrent state, carried across the time grid
    #   gx_ref:   (Tt, Bt, 4Hp) bf16 hoisted input projection for this tile
    #   hs_ref:   (Tt, Bt, Hp)  bf16 per-step hidden states for this tile
    t_blk = pl.program_id(1)
    Tt, Bt, E = x_ref.shape
    Hp = h_ref.shape[1]
    Vp = out_ref.shape[2]

    @pl.when(t_blk == 0)
    def _init():
        h_ref[...] = jnp.zeros_like(h_ref)
        c_ref[...] = jnp.zeros_like(c_ref)

    # ---- Hoisted input projection (off the serial path): ONE flattened MXU call.
    x_flat = x_ref[...].reshape(Tt * Bt, E)                      # free reshape (lane dim kept)
    gx = jnp.dot(x_flat, w_ih_ref[...],
                 preferred_element_type=jnp.float32) + b_ref[...]
    gx_ref[...] = gx.reshape(Tt, Bt, 4 * Hp).astype(gx_ref.dtype)

    # ---- Serial LSTM recurrence: only h @ W_hh + gate math per step.
    w_hh = w_hh_ref[...]

    def step(t, carry):
        h, c = carry
        gates = gx_ref[t] + jnp.dot(h.astype(w_hh.dtype), w_hh,
                                    preferred_element_type=jnp.float32)   # (Bt, 4Hp) f32
        # Gate columns were prepped as (i, f, o, g): one contiguous sigmoid + one tanh,
        # all slices are 128-lane aligned vreg views (Hp is a multiple of 128).
        ifo = jax.nn.sigmoid(gates[:, :3 * Hp])
        g_g = jnp.tanh(gates[:, 3 * Hp:])
        i_g = ifo[:, :Hp]
        f_g = ifo[:, Hp:2 * Hp]
        o_g = ifo[:, 2 * Hp:]
        c_new = f_g * c + i_g * g_g
        h_new = o_g * jnp.tanh(c_new)
        hs_ref[t] = h_new.astype(hs_ref.dtype)
        return (h_new, c_new)

    h_last, c_last = lax.fori_loop(0, Tt, step, (h_ref[...], c_ref[...]),
                                   unroll=min(8, Tt))            # bounded unroll
    h_ref[...] = h_last                                          # carry across time grid
    c_ref[...] = c_last

    # ---- Hoisted final Linear (off the serial path): ONE flattened MXU call with
    #      lane-dense batch-first stores.  The (T,B)->(B,T) relayout happens on the
    #      small Hp-sized hidden states, not on the Vp-sized logits.
    hs_bt = pltpu.einshape("tbh->bth", hs_ref[...])              # (Bt, Tt, Hp) bf16
    logits = jnp.dot(hs_bt.reshape(Bt * Tt, Hp), w_f_ref[...],
                     preferred_element_type=jnp.float32) + b_f_ref[...]
    out_ref[...] = logits.reshape(Bt, Tt, Vp).astype(out_ref.dtype)


def init_params(key, vocab_size, embed_size, hidden_size):
    ks = jax.random.split(key, 7)
    kh = 1.0 / np.sqrt(hidden_size)
    params = {
        # nn.Embedding: N(0, 1)
        "embed": jax.random.normal(ks[0], (vocab_size, embed_size), jnp.float32),
        # nn.LSTM params: U(-1/sqrt(H), 1/sqrt(H)); stored transposed for x @ W,
        # PyTorch gate order (i, f, g, o) along the 4H axis.
        "w_ih": jax.random.uniform(ks[1], (embed_size, 4 * hidden_size),
                                   jnp.float32, -kh, kh),
        "w_hh": jax.random.uniform(ks[2], (hidden_size, 4 * hidden_size),
                                   jnp.float32, -kh, kh),
        "b": (jax.random.uniform(ks[3], (1, 4 * hidden_size), jnp.float32, -kh, kh)
              + jax.random.uniform(ks[4], (1, 4 * hidden_size), jnp.float32, -kh, kh)),
        # nn.Linear(hidden, vocab): U(-1/sqrt(H), 1/sqrt(H)); stored transposed
        "w_f": jax.random.uniform(ks[5], (hidden_size, vocab_size),
                                  jnp.float32, -kh, kh),
        "b_f": jax.random.uniform(ks[6], (1, vocab_size), jnp.float32, -kh, kh),
    }
    return params


def _prep_kernel_params(params, Hp, Vp):
    """Permute gate columns (i,f,g,o) -> (i,f,o,g), zero-pad each gate block to Hp,
    pad H/V of the final Linear, cast matmul operands to bf16."""
    H = params["w_hh"].shape[0]
    V = params["w_f"].shape[1]

    def pack_gates(w):                       # w: (rows, 4H), PyTorch order (i, f, g, o)
        rows = w.shape[0]
        i_b, f_b, g_b, o_b = jnp.split(w, 4, axis=1)
        out = jnp.zeros((rows, 4 * Hp), w.dtype)
        for k, blk in enumerate((i_b, f_b, o_b, g_b)):   # reorder to (i, f, o, g)
            out = out.at[:, k * Hp:k * Hp + H].set(blk)
        return out

    w_ih = pack_gates(params["w_ih"])                                  # (E, 4Hp)
    w_hh = jnp.zeros((Hp, 4 * Hp), params["w_hh"].dtype)
    w_hh = w_hh.at[:H, :].set(pack_gates(params["w_hh"]))              # (Hp, 4Hp)
    b = pack_gates(params["b"])                                        # (1, 4Hp)
    w_f = jnp.zeros((Hp, Vp), params["w_f"].dtype).at[:H, :V].set(params["w_f"])
    b_f = jnp.zeros((1, Vp), params["b_f"].dtype).at[:, :V].set(params["b_f"])
    return (w_ih.astype(jnp.bfloat16), w_hh.astype(jnp.bfloat16), b,
            w_f.astype(jnp.bfloat16), b_f)


@functools.partial(jax.jit, static_argnames=("bt", "tt"))
def rnn_forward(tokens, params, bt=None, tt=None):
    # tokens: (B, T) int32
    embed = params["embed"]
    B, T = tokens.shape
    E = embed.shape[1]
    H = params["w_hh"].shape[0]
    V = params["w_f"].shape[1]

    # Pad H/V to 128-lane multiples so gate slices and h/c tiles are lane-aligned.
    Hp = _round_up(H, 128)
    Vp = _round_up(V, 128)
    w_ih, w_hh, b, w_f, b_f = _prep_kernel_params(params, Hp, Vp)

    # ---- Tiling heuristics ----------------------------------------------------
    if bt is None:
        bt = min(128, _round_up(B, 8))
        if B >= 16 and bt > 8:
            # Keep >= 2 batch blocks so the "parallel" axis can shard across v7x's 2 TCs.
            bt = max(8, _round_up((B + 1) // 2, 8))
    if tt is None:
        tt = min(128, _round_up(T, 8))

    # Keep scratch + double-buffered tiles within a generation-aware VMEM budget.
    limit = _vmem_limit_bytes()

    def _tile_bytes(bt_, tt_):
        gx_hs = tt_ * bt_ * (4 * Hp + Hp) * 2                        # bf16 scratch
        x_io = 2 * tt_ * bt_ * E * 2 + 2 * bt_ * tt_ * Vp * 4        # 2x-buffered x + out
        state = 2 * bt_ * Hp * 4
        weights = (E * 4 * Hp + Hp * 4 * Hp + Hp * Vp) * 2 + (4 * Hp + Vp) * 4
        return gx_hs + x_io + state + weights

    while tt > 8 and _tile_bytes(bt, tt) > limit // 2:
        tt = max(8, _round_up(tt // 2, 8))

    B_pad = _round_up(B, bt)
    T_pad = _round_up(T, tt)

    tokens_p = jnp.pad(tokens, ((0, B_pad - B), (0, T_pad - T)))
    # Gather the embedding directly in time-major order (no big activation transpose).
    # TODO(synk): fuse this gather into the kernel via scalar-prefetched token ids +
    # row-gather DMA instead of materializing x = (T, B, E) through HBM.
    x = jnp.take(embed, tokens_p.T, axis=0).astype(jnp.bfloat16)     # (T_pad, B_pad, E)

    grid = (B_pad // bt, T_pad // tt)

    out_padded = pl.pallas_call(
        rnn_lstm_kernel,
        out_shape=jax.ShapeDtypeStruct((B_pad, T_pad, Vp), jnp.float32),
        grid=grid,
        in_specs=[
            pl.BlockSpec((tt, bt, E), lambda bi, ti: (ti, bi, 0)),    # x (pipelined)
            pl.BlockSpec((E, 4 * Hp), lambda bi, ti: (0, 0)),         # w_ih (resident)
            pl.BlockSpec((Hp, 4 * Hp), lambda bi, ti: (0, 0)),        # w_hh
            pl.BlockSpec((1, 4 * Hp), lambda bi, ti: (0, 0)),         # b_ih + b_hh
            # TODO(synk): for realistic vocab sizes, tile w_f/b_f/out along V (extra grid
            # axis) or run the final Linear as a plain XLA matmul instead of resident w_f.
            pl.BlockSpec((Hp, Vp), lambda bi, ti: (0, 0)),            # w_f
            pl.BlockSpec((1, Vp), lambda bi, ti: (0, 0)),             # b_f
        ],
        out_specs=pl.BlockSpec((bt, tt, Vp), lambda bi, ti: (bi, ti, 0)),
        scratch_shapes=[
            pltpu.VMEM((bt, Hp), jnp.float32),              # h state (carried)
            pltpu.VMEM((bt, Hp), jnp.float32),              # c state (carried)
            pltpu.VMEM((tt, bt, 4 * Hp), jnp.bfloat16),     # hoisted input gates
            pltpu.VMEM((tt, bt, Hp), jnp.bfloat16),         # per-tile hidden states
        ],
        compiler_params=pltpu.CompilerParams(
            dimension_semantics=("parallel", "arbitrary"),  # time must stay innermost
            vmem_limit_bytes=limit,
        ),
    )(x, w_ih, w_hh, b, w_f, b_f)

    return out_padded[:B, :T, :V]                           # (B, T, V), batch_first


def rnn_reference(tokens, params):
    # Pure-JAX reference mimicking the kernel numerics: bf16 matmul operands with f32
    # accumulation, gx and per-step hidden states rounded through bf16.
    embed = params["embed"]
    w_ih = params["w_ih"].astype(jnp.bfloat16)
    w_hh = params["w_hh"].astype(jnp.bfloat16)
    w_f = params["w_f"].astype(jnp.bfloat16)
    b, b_f = params["b"], params["b_f"]
    H = params["w_hh"].shape[0]
    B = tokens.shape[0]

    x = jnp.take(embed, tokens.T, axis=0).astype(jnp.bfloat16)        # (T, B, E)
    gates_x = (jax.vmap(
        lambda xt: jnp.dot(xt, w_ih, preferred_element_type=jnp.float32))(x)
        + b).astype(jnp.bfloat16)                                     # kernel stores gx bf16

    def step(carry, gx):
        h, c = carry
        gates = gx.astype(jnp.float32) + jnp.dot(
            h.astype(jnp.bfloat16), w_hh, preferred_element_type=jnp.float32)
        i_g = jax.nn.sigmoid(gates[:, 0 * H:1 * H])
        f_g = jax.nn.sigmoid(gates[:, 1 * H:2 * H])
        g_g = jnp.tanh(gates[:, 2 * H:3 * H])
        o_g = jax.nn.sigmoid(gates[:, 3 * H:4 * H])
        c_new = f_g * c + i_g * g_g
        h_new = o_g * jnp.tanh(c_new)
        return (h_new, c_new), h_new.astype(jnp.bfloat16)             # kernel stores hs bf16

    init = (jnp.zeros((B, H), jnp.float32), jnp.zeros((B, H), jnp.float32))
    _, hs = lax.scan(step, init, gates_x)                             # (T, B, H) bf16
    out = jax.vmap(
        lambda ht: jnp.dot(ht, w_f, preferred_element_type=jnp.float32))(hs) + b_f
    return jnp.transpose(out, (1, 0, 2))                              # (B, T, V)


if __name__ == "__main__":
    vocab_size, embed_size, hidden_size = 128, 32, 32
    batch, seq = 2, 16   # seq=16 with tt=8 exercises the h/c carry across time blocks

    key = jax.random.PRNGKey(0)
    k_params, k_tokens = jax.random.split(key)
    params = init_params(k_params, vocab_size, embed_size, hidden_size)
    tokens = jax.random.randint(k_tokens, (batch, seq), 0, vocab_size,
                                dtype=jnp.int32)

    out = jax.block_until_ready(rnn_forward(tokens, params, tt=8))
    assert out.shape == (batch, seq, vocab_size)

    ref = jax.block_until_ready(rnn_reference(tokens, params))
    np.testing.assert_allclose(np.asarray(out), np.asarray(ref),
                               rtol=5e-3, atol=5e-3)

    print("KERNEL_OK")
</pallas_src>

<mosaic_0001>
module attributes {stable_mosaic.version = 11 : i64} {
  func.func @rnn_lstm_kernel(%arg0: i32, %arg1: i32, %arg2: memref<8x8x32xbf16, #tpu.memory_space<vmem>>, %arg3: memref<32x512xbf16, #tpu.memory_space<vmem>>, %arg4: memref<128x512xbf16, #tpu.memory_space<vmem>>, %arg5: memref<1x512xf32, #tpu.memory_space<vmem>>, %arg6: memref<128x128xbf16, #tpu.memory_space<vmem>>, %arg7: memref<1x128xf32, #tpu.memory_space<vmem>>, %arg8: memref<8x8x128xf32, #tpu.memory_space<vmem>>, %arg9: memref<8x128xf32, #tpu.memory_space<vmem>>, %arg10: memref<8x128xf32, #tpu.memory_space<vmem>>, %arg11: memref<8x8x512xbf16, #tpu.memory_space<vmem>>, %arg12: memref<8x8x128xbf16, #tpu.memory_space<vmem>>) attributes {dimension_semantics = [#tpu.dimension_semantics<parallel>, #tpu.dimension_semantics<arbitrary>], iteration_bounds = array<i64: 1, 2>, scalar_prefetch = 0 : i64, scratch_operands = 4 : i64, tpu.core_type = #tpu.core_type<tc>, window_params = [{transform_indices = @transform_0, window_bounds = array<i64: 8, 8, 32>}, {pipeline_mode = #tpu.pipeline_mode<synchronous>, transform_indices = @transform_1, window_bounds = array<i64: 32, 512>}, {pipeline_mode = #tpu.pipeline_mode<synchronous>, transform_indices = @transform_2, window_bounds = array<i64: 128, 512>}, {pipeline_mode = #tpu.pipeline_mode<synchronous>, transform_indices = @transform_3, window_bounds = array<i64: 1, 512>}, {pipeline_mode = #tpu.pipeline_mode<synchronous>, transform_indices = @transform_4, window_bounds = array<i64: 128, 128>}, {pipeline_mode = #tpu.pipeline_mode<synchronous>, transform_indices = @transform_5, window_bounds = array<i64: 1, 128>}, {transform_indices = @transform_6, window_bounds = array<i64: 8, 8, 128>}]} {
    %c0_i32 = arith.constant 0 : i32
    %0 = arith.cmpi eq, %arg1, %c0_i32 : i32
    %1 = arith.extui %0 : i1 to i32
    %c0_i32_0 = arith.constant 0 : i32
    %2 = arith.cmpi ne, %1, %c0_i32_0 : i32
    scf.if %2 {
      %cst_80 = arith.constant 0.000000e+00 : f32
      %252 = vector.broadcast %cst_80 : f32 to vector<8x128xf32>
      %c0_81 = arith.constant 0 : index
      %c0_82 = arith.constant 0 : index
      %253 = vector.load %arg9[%c0_81, %c0_82] : memref<8x128xf32, #tpu.memory_space<vmem>>, vector<8x128xf32>
      tpu.vector_store %arg9[%c0_81, %c0_82], %252 {strides = array<i32>} : memref<8x128xf32, #tpu.memory_space<vmem>>, vector<8x128xf32>,
      %cst_83 = arith.constant 0.000000e+00 : f32
      %254 = vector.broadcast %cst_83 : f32 to vector<8x128xf32>
      %c0_84 = arith.constant 0 : index
      %c0_85 = arith.constant 0 : index
      %255 = vector.load %arg10[%c0_84, %c0_85] : memref<8x128xf32, #tpu.memory_space<vmem>>, vector<8x128xf32>
      tpu.vector_store %arg10[%c0_84, %c0_85], %254 {strides = array<i32>} : memref<8x128xf32, #tpu.memory_space<vmem>>, vector<8x128xf32>,
    } else {
    }
    %c0 = arith.constant 0 : index
    %c0_1 = arith.constant 0 : index
    %c0_2 = arith.constant 0 : index
    %3 = vector.load %arg2[%c0, %c0_1, %c0_2] : memref<8x8x32xbf16, #tpu.memory_space<vmem>>, vector<8x8x32xbf16>
    %4 = vector.shape_cast %3 : vector<8x8x32xbf16> to vector<64x32xbf16>
    %c0_3 = arith.constant 0 : index
    %c0_4 = arith.constant 0 : index
    %5 = vector.load %arg3[%c0_3, %c0_4] : memref<32x512xbf16, #tpu.memory_space<vmem>>, vector<32x512xbf16>
    %cst = arith.constant dense<0.000000e+00> : vector<64x512xf32>
    %6 = tpu.matmul %4, %5, %cst {dimension_numbers = #tpu.dot_dimension_numbers<[1], [0], [0], [1], [0, 0, 1, 1], [], []>} : vector<64x32xbf16>, vector<32x512xbf16>, vector<64x512xf32> -> vector<64x512xf32>
    %c0_5 = arith.constant 0 : index
    %c0_6 = arith.constant 0 : index
    %7 = vector.load %arg5[%c0_5, %c0_6] : memref<1x512xf32, #tpu.memory_space<vmem>>, vector<1x512xf32>
    %8 = vector.broadcast %7 : vector<1x512xf32> to vector<64x512xf32>
    %9 = arith.addf %6, %8 : vector<64x512xf32>
    %10 = vector.shape_cast %9 : vector<64x512xf32> to vector<8x8x512xf32>
    %11 = arith.truncf %10 : vector<8x8x512xf32> to vector<8x8x512xbf16>
    %c0_7 = arith.constant 0 : index
    %c0_8 = arith.constant 0 : index
    %c0_9 = arith.constant 0 : index
    %12 = vector.load %arg11[%c0_7, %c0_8, %c0_9] : memref<8x8x512xbf16, #tpu.memory_space<vmem>>, vector<8x8x512xbf16>
    tpu.vector_store %arg11[%c0_7, %c0_8, %c0_9], %11 {strides = array<i32>} : memref<8x8x512xbf16, #tpu.memory_space<vmem>>, vector<8x8x512xbf16>,
    %c0_10 = arith.constant 0 : index
    %c0_11 = arith.constant 0 : index
    %13 = vector.load %arg4[%c0_10, %c0_11] : memref<128x512xbf16, #tpu.memory_space<vmem>>, vector<128x512xbf16>
    %c0_12 = arith.constant 0 : index
    %c0_13 = arith.constant 0 : index
    %14 = vector.load %arg9[%c0_12, %c0_13] : memref<8x128xf32, #tpu.memory_space<vmem>>, vector<8x128xf32>
    %c0_14 = arith.constant 0 : index
    %c0_15 = arith.constant 0 : index
    %15 = vector.load %arg10[%c0_14, %c0_15] : memref<8x128xf32, #tpu.memory_space<vmem>>, vector<8x128xf32>
    %c0_i32_16 = arith.constant 0 : i32
    %16 = arith.index_cast %c0_i32_16 : i32 to index
    %c0_17 = arith.constant 0 : index
    %c0_18 = arith.constant 0 : index
    %17 = vector.load %arg11[%16, %c0_17, %c0_18] : memref<8x8x512xbf16, #tpu.memory_space<vmem>>, vector<1x8x512xbf16>
    %18 = vector.shape_cast %17 : vector<1x8x512xbf16> to vector<8x512xbf16>
    %19 = arith.truncf %14 : vector<8x128xf32> to vector<8x128xbf16>
    %cst_19 = arith.constant dense<0.000000e+00> : vector<8x512xf32>
    %20 = tpu.matmul %19, %13, %cst_19 {dimension_numbers = #tpu.dot_dimension_numbers<[1], [0], [0], [1], [0, 0, 1, 1], [], []>} : vector<8x128xbf16>, vector<128x512xbf16>, vector<8x512xf32> -> vector<8x512xf32>
    %21 = arith.extf %18 : vector<8x512xbf16> to vector<8x512xf32>
    %22 = arith.addf %21, %20 : vector<8x512xf32>
    %23 = vector.extract_strided_slice %22 {offsets = [0, 0], sizes = [8, 384], strides = [1, 1]} : vector<8x512xf32> to vector<8x384xf32>
    %24 = arith.negf %23 : vector<8x384xf32>
    %25 = math.exp %24 : vector<8x384xf32>
    %cst_20 = arith.constant 1.000000e+00 : f32
    %26 = vector.broadcast %cst_20 : f32 to vector<8x384xf32>
    %27 = arith.addf %26, %25 : vector<8x384xf32>
    %28 = arith.divf %26, %27 : vector<8x384xf32>
    %29 = vector.extract_strided_slice %22 {offsets = [0, 384], sizes = [8, 128], strides = [1, 1]} : vector<8x512xf32> to vector<8x128xf32>
    %30 = math.tanh %29 : vector<8x128xf32>
    %31 = vector.extract_strided_slice %28 {offsets = [0, 0], sizes = [8, 128], strides = [1, 1]} : vector<8x384xf32> to vector<8x128xf32>
    %32 = vector.extract_strided_slice %28 {offsets = [0, 128], sizes = [8, 128], strides = [1, 1]} : vector<8x384xf32> to vector<8x128xf32>
    %33 = vector.extract_strided_slice %28 {offsets = [0, 256], sizes = [8, 128], strides = [1, 1]} : vector<8x384xf32> to vector<8x128xf32>
    %34 = arith.mulf %32, %15 : vector<8x128xf32>
    %35 = arith.mulf %31, %30 : vector<8x128xf32>
    %36 = arith.addf %34, %35 : vector<8x128xf32>
    %37 = math.tanh %36 : vector<8x128xf32>
    %38 = arith.mulf %33, %37 : vector<8x128xf32>
    %39 = arith.truncf %38 : vector<8x128xf32> to vector<8x128xbf16>
    %40 = arith.index_cast %c0_i32_16 : i32 to index
    %c0_21 = arith.constant 0 : index
    %c0_22 = arith.constant 0 : index
    %41 = vector.load %arg12[%40, %c0_21, %c0_22] : memref<8x8x128xbf16, #tpu.memory_space<vmem>>, vector<1x8x128xbf16>
    %42 = vector.shape_cast %41 : vector<1x8x128xbf16> to vector<8x128xbf16>
    %43 = vector.shape_cast %39 : vector<8x128xbf16> to vector<1x8x128xbf16>
    tpu.vector_store %arg12[%40, %c0_21, %c0_22], %43 {strides = array<i32>} : memref<8x8x128xbf16, #tpu.memory_space<vmem>>, vector<1x8x128xbf16>,
    %c1_i32 = arith.constant 1 : i32
    %44 = arith.index_cast %c1_i32 : i32 to index
    %c0_23 = arith.constant 0 : index
    %c0_24 = arith.constant 0 : index
    %45 = vector.load %arg11[%44, %c0_23, %c0_24] : memref<8x8x512xbf16, #tpu.memory_space<vmem>>, vector<1x8x512xbf16>
    %46 = vector.shape_cast %45 : vector<1x8x512xbf16> to vector<8x512xbf16>
    %47 = arith.truncf %38 : vector<8x128xf32> to vector<8x128xbf16>
    %cst_25 = arith.constant dense<0.000000e+00> : vector<8x512xf32>
    %48 = tpu.matmul %47, %13, %cst_25 {dimension_numbers = #tpu.dot_dimension_numbers<[1], [0], [0], [1], [0, 0, 1, 1], [], []>} : vector<8x128xbf16>, vector<128x512xbf16>, vector<8x512xf32> -> vector<8x512xf32>
    %49 = arith.extf %46 : vector<8x512xbf16> to vector<8x512xf32>
    %50 = arith.addf %49, %48 : vector<8x512xf32>
    %51 = vector.extract_strided_slice %50 {offsets = [0, 0], sizes = [8, 384], strides = [1, 1]} : vector<8x512xf32> to vector<8x384xf32>
    %52 = arith.negf %51 : vector<8x384xf32>
    %53 = math.exp %52 : vector<8x384xf32>
    %cst_26 = arith.constant 1.000000e+00 : f32
    %54 = vector.broadcast %cst_26 : f32 to vector<8x384xf32>
    %55 = arith.addf %54, %53 : vector<8x384xf32>
    %56 = arith.divf %54, %55 : vector<8x384xf32>
    %57 = vector.extract_strided_slice %50 {offsets = [0, 384], sizes = [8, 128], strides = [1, 1]} : vector<8x512xf32> to vector<8x128xf32>
    %58 = math.tanh %57 : vector<8x128xf32>
    %59 = vector.extract_strided_slice %56 {offsets = [0, 0], sizes = [8, 128], strides = [1, 1]} : vector<8x384xf32> to vector<8x128xf32>
    %60 = vector.extract_strided_slice %56 {offsets = [0, 128], sizes = [8, 128], strides = [1, 1]} : vector<8x384xf32> to vector<8x128xf32>
    %61 = vector.extract_strided_slice %56 {offsets = [0, 256], sizes = [8, 128], strides = [1, 1]} : vector<8x384xf32> to vector<8x128xf32>
    %62 = arith.mulf %60, %36 : vector<8x128xf32>
    %63 = arith.mulf %59, %58 : vector<8x128xf32>
    %64 = arith.addf %62, %63 : vector<8x128xf32>
    %65 = math.tanh %64 : vector<8x128xf32>
    %66 = arith.mulf %61, %65 : vector<8x128xf32>
    %67 = arith.truncf %66 : vector<8x128xf32> to vector<8x128xbf16>
    %68 = arith.index_cast %c1_i32 : i32 to index
    %c0_27 = arith.constant 0 : index
    %c0_28 = arith.constant 0 : index
    %69 = vector.load %arg12[%68, %c0_27, %c0_28] : memref<8x8x128xbf16, #tpu.memory_space<vmem>>, vector<1x8x128xbf16>
    %70 = vector.shape_cast %69 : vector<1x8x128xbf16> to vector<8x128xbf16>
    %71 = vector.shape_cast %67 : vector<8x128xbf16> to vector<1x8x128xbf16>
    tpu.vector_store %arg12[%68, %c0_27, %c0_28], %71 {strides = array<i32>} : memref<8x8x128xbf16, #tpu.memory_space<vmem>>, vector<1x8x128xbf16>,
    %c2_i32 = arith.constant 2 : i32
    %72 = arith.index_cast %c2_i32 : i32 to index
    %c0_29 = arith.constant 0 : index
    %c0_30 = arith.constant 0 : index
    %73 = vector.load %arg11[%72, %c0_29, %c0_30] : memref<8x8x512xbf16, #tpu.memory_space<vmem>>, vector<1x8x512xbf16>
    %74 = vector.shape_cast %73 : vector<1x8x512xbf16> to vector<8x512xbf16>
    %75 = arith.truncf %66 : vector<8x128xf32> to vector<8x128xbf16>
    %cst_31 = arith.constant dense<0.000000e+00> : vector<8x512xf32>
    %76 = tpu.matmul %75, %13, %cst_31 {dimension_numbers = #tpu.dot_dimension_numbers<[1], [0], [0], [1], [0, 0, 1, 1], [], []>} : vector<8x128xbf16>, vector<128x512xbf16>, vector<8x512xf32> -> vector<8x512xf32>
    %77 = arith.extf %74 : vector<8x512xbf16> to vector<8x512xf32>
    %78 = arith.addf %77, %76 : vector<8x512xf32>
    %79 = vector.extract_strided_slice %78 {offsets = [0, 0], sizes = [8, 384], strides = [1, 1]} : vector<8x512xf32> to vector<8x384xf32>
    %80 = arith.negf %79 : vector<8x384xf32>
    %81 = math.exp %80 : vector<8x384xf32>
    %cst_32 = arith.constant 1.000000e+00 : f32
    %82 = vector.broadcast %cst_32 : f32 to vector<8x384xf32>
    %83 = arith.addf %82, %81 : vector<8x384xf32>
    %84 = arith.divf %82, %83 : vector<8x384xf32>
    %85 = vector.extract_strided_slice %78 {offsets = [0, 384], sizes = [8, 128], strides = [1, 1]} : vector<8x512xf32> to vector<8x128xf32>
    %86 = math.tanh %85 : vector<8x128xf32>
    %87 = vector.extract_strided_slice %84 {offsets = [0, 0], sizes = [8, 128], strides = [1, 1]} : vector<8x384xf32> to vector<8x128xf32>
    %88 = vector.extract_strided_slice %84 {offsets = [0, 128], sizes = [8, 128], strides = [1, 1]} : vector<8x384xf32> to vector<8x128xf32>
    %89 = vector.extract_strided_slice %84 {offsets = [0, 256], sizes = [8, 128], strides = [1, 1]} : vector<8x384xf32> to vector<8x128xf32>
    %90 = arith.mulf %88, %64 : vector<8x128xf32>
    %91 = arith.mulf %87, %86 : vector<8x128xf32>
    %92 = arith.addf %90, %91 : vector<8x128xf32>
    %93 = math.tanh %92 : vector<8x128xf32>
    %94 = arith.mulf %89, %93 : vector<8x128xf32>
    %95 = arith.truncf %94 : vector<8x128xf32> to vector<8x128xbf16>
    %96 = arith.index_cast %c2_i32 : i32 to index
    %c0_33 = arith.constant 0 : index
    %c0_34 = arith.constant 0 : index
    %97 = vector.load %arg12[%96, %c0_33, %c0_34] : memref<8x8x128xbf16, #tpu.memory_space<vmem>>, vector<1x8x128xbf16>
    %98 = vector.shape_cast %97 : vector<1x8x128xbf16> to vector<8x128xbf16>
    %99 = vector.shape_cast %95 : vector<8x128xbf16> to vector<1x8x128xbf16>
    tpu.vector_store %arg12[%96, %c0_33, %c0_34], %99 {strides = array<i32>} : memref<8x8x128xbf16, #tpu.memory_space<vmem>>, vector<1x8x128xbf16>,
    %c3_i32 = arith.constant 3 : i32
    %100 = arith.index_cast %c3_i32 : i32 to index
    %c0_35 = arith.constant 0 : index
    %c0_36 = arith.constant 0 : index
    %101 = vector.load %arg11[%100, %c0_35, %c0_36] : memref<8x8x512xbf16, #tpu.memory_space<vmem>>, vector<1x8x512xbf16>
    %102 = vector.shape_cast %101 : vector<1x8x512xbf16> to vector<8x512xbf16>
    %103 = arith.truncf %94 : vector<8x128xf32> to vector<8x128xbf16>
    %cst_37 = arith.constant dense<0.000000e+00> : vector<8x512xf32>
    %104 = tpu.matmul %103, %13, %cst_37 {dimension_numbers = #tpu.dot_dimension_numbers<[1], [0], [0], [1], [0, 0, 1, 1], [], []>} : vector<8x128xbf16>, vector<128x512xbf16>, vector<8x512xf32> -> vector<8x512xf32>
    %105 = arith.extf %102 : vector<8x512xbf16> to vector<8x512xf32>
    %106 = arith.addf %105, %104 : vector<8x512xf32>
    %107 = vector.extract_strided_slice %106 {offsets = [0, 0], sizes = [8, 384], strides = [1, 1]} : vector<8x512xf32> to vector<8x384xf32>
    %108 = arith.negf %107 : vector<8x384xf32>
    %109 = math.exp %108 : vector<8x384xf32>
    %cst_38 = arith.constant 1.000000e+00 : f32
    %110 = vector.broadcast %cst_38 : f32 to vector<8x384xf32>
    %111 = arith.addf %110, %109 : vector<8x384xf32>
    %112 = arith.divf %110, %111 : vector<8x384xf32>
    %113 = vector.extract_strided_slice %106 {offsets = [0, 384], sizes = [8, 128], strides = [1, 1]} : vector<8x512xf32> to vector<8x128xf32>
    %114 = math.tanh %113 : vector<8x128xf32>
    %115 = vector.extract_strided_slice %112 {offsets = [0, 0], sizes = [8, 128], strides = [1, 1]} : vector<8x384xf32> to vector<8x128xf32>
    %116 = vector.extract_strided_slice %112 {offsets = [0, 128], sizes = [8, 128], strides = [1, 1]} : vector<8x384xf32> to vector<8x128xf32>
    %117 = vector.extract_strided_slice %112 {offsets = [0, 256], sizes = [8, 128], strides = [1, 1]} : vector<8x384xf32> to vector<8x128xf32>
    %118 = arith.mulf %116, %92 : vector<8x128xf32>
    %119 = arith.mulf %115, %114 : vector<8x128xf32>
    %120 = arith.addf %118, %119 : vector<8x128xf32>
    %121 = math.tanh %120 : vector<8x128xf32>
    %122 = arith.mulf %117, %121 : vector<8x128xf32>
    %123 = arith.truncf %122 : vector<8x128xf32> to vector<8x128xbf16>
    %124 = arith.index_cast %c3_i32 : i32 to index
    %c0_39 = arith.constant 0 : index
    %c0_40 = arith.constant 0 : index
    %125 = vector.load %arg12[%124, %c0_39, %c0_40] : memref<8x8x128xbf16, #tpu.memory_space<vmem>>, vector<1x8x128xbf16>
    %126 = vector.shape_cast %125 : vector<1x8x128xbf16> to vector<8x128xbf16>
    %127 = vector.shape_cast %123 : vector<8x128xbf16> to vector<1x8x128xbf16>
    tpu.vector_store %arg12[%124, %c0_39, %c0_40], %127 {strides = array<i32>} : memref<8x8x128xbf16, #tpu.memory_space<vmem>>, vector<1x8x128xbf16>,
    %c4_i32 = arith.constant 4 : i32
    %128 = arith.index_cast %c4_i32 : i32 to index
    %c0_41 = arith.constant 0 : index
    %c0_42 = arith.constant 0 : index
    %129 = vector.load %arg11[%128, %c0_41, %c0_42] : memref<8x8x512xbf16, #tpu.memory_space<vmem>>, vector<1x8x512xbf16>
    %130 = vector.shape_cast %129 : vector<1x8x512xbf16> to vector<8x512xbf16>
    %131 = arith.truncf %122 : vector<8x128xf32> to vector<8x128xbf16>
    %cst_43 = arith.constant dense<0.000000e+00> : vector<8x512xf32>
    %132 = tpu.matmul %131, %13, %cst_43 {dimension_numbers = #tpu.dot_dimension_numbers<[1], [0], [0], [1], [0, 0, 1, 1], [], []>} : vector<8x128xbf16>, vector<128x512xbf16>, vector<8x512xf32> -> vector<8x512xf32>
    %133 = arith.extf %130 : vector<8x512xbf16> to vector<8x512xf32>
    %134 = arith.addf %133, %132 : vector<8x512xf32>
    %135 = vector.extract_strided_slice %134 {offsets = [0, 0], sizes = [8, 384], strides = [1, 1]} : vector<8x512xf32> to vector<8x384xf32>
    %136 = arith.negf %135 : vector<8x384xf32>
    %137 = math.exp %136 : vector<8x384xf32>
    %cst_44 = arith.constant 1.000000e+00 : f32
    %138 = vector.broadcast %cst_44 : f32 to vector<8x384xf32>
    %139 = arith.addf %138, %137 : vector<8x384xf32>
    %140 = arith.divf %138, %139 : vector<8x384xf32>
    %141 = vector.extract_strided_slice %134 {offsets = [0, 384], sizes = [8, 128], strides = [1, 1]} : vector<8x512xf32> to vector<8x128xf32>
    %142 = math.tanh %141 : vector<8x128xf32>
    %143 = vector.extract_strided_slice %140 {offsets = [0, 0], sizes = [8, 128], strides = [1, 1]} : vector<8x384xf32> to vector<8x128xf32>
    %144 = vector.extract_strided_slice %140 {offsets = [0, 128], sizes = [8, 128], strides = [1, 1]} : vector<8x384xf32> to vector<8x128xf32>
    %145 = vector.extract_strided_slice %140 {offsets = [0, 256], sizes = [8, 128], strides = [1, 1]} : vector<8x384xf32> to vector<8x128xf32>
    %146 = arith.mulf %144, %120 : vector<8x128xf32>
    %147 = arith.mulf %143, %142 : vector<8x128xf32>
    %148 = arith.addf %146, %147 : vector<8x128xf32>
    %149 = math.tanh %148 : vector<8x128xf32>
    %150 = arith.mulf %145, %149 : vector<8x128xf32>
    %151 = arith.truncf %150 : vector<8x128xf32> to vector<8x128xbf16>
    %152 = arith.index_cast %c4_i32 : i32 to index
    %c0_45 = arith.constant 0 : index
    %c0_46 = arith.constant 0 : index
    %153 = vector.load %arg12[%152, %c0_45, %c0_46] : memref<8x8x128xbf16, #tpu.memory_space<vmem>>, vector<1x8x128xbf16>
    %154 = vector.shape_cast %153 : vector<1x8x128xbf16> to vector<8x128xbf16>
    %155 = vector.shape_cast %151 : vector<8x128xbf16> to vector<1x8x128xbf16>
    tpu.vector_store %arg12[%152, %c0_45, %c0_46], %155 {strides = array<i32>} : memref<8x8x128xbf16, #tpu.memory_space<vmem>>, vector<1x8x128xbf16>,
    %c5_i32 = arith.constant 5 : i32
    %156 = arith.index_cast %c5_i32 : i32 to index
    %c0_47 = arith.constant 0 : index
    %c0_48 = arith.constant 0 : index
    %157 = vector.load %arg11[%156, %c0_47, %c0_48] : memref<8x8x512xbf16, #tpu.memory_space<vmem>>, vector<1x8x512xbf16>
    %158 = vector.shape_cast %157 : vector<1x8x512xbf16> to vector<8x512xbf16>
    %159 = arith.truncf %150 : vector<8x128xf32> to vector<8x128xbf16>
    %cst_49 = arith.constant dense<0.000000e+00> : vector<8x512xf32>
    %160 = tpu.matmul %159, %13, %cst_49 {dimension_numbers = #tpu.dot_dimension_numbers<[1], [0], [0], [1], [0, 0, 1, 1], [], []>} : vector<8x128xbf16>, vector<128x512xbf16>, vector<8x512xf32> -> vector<8x512xf32>
    %161 = arith.extf %158 : vector<8x512xbf16> to vector<8x512xf32>
    %162 = arith.addf %161, %160 : vector<8x512xf32>
    %163 = vector.extract_strided_slice %162 {offsets = [0, 0], sizes = [8, 384], strides = [1, 1]} : vector<8x512xf32> to vector<8x384xf32>
    %164 = arith.negf %163 : vector<8x384xf32>
    %165 = math.exp %164 : vector<8x384xf32>
    %cst_50 = arith.constant 1.000000e+00 : f32
    %166 = vector.broadcast %cst_50 : f32 to vector<8x384xf32>
    %167 = arith.addf %166, %165 : vector<8x384xf32>
    %168 = arith.divf %166, %167 : vector<8x384xf32>
    %169 = vector.extract_strided_slice %162 {offsets = [0, 384], sizes = [8, 128], strides = [1, 1]} : vector<8x512xf32> to vector<8x128xf32>
    %170 = math.tanh %169 : vector<8x128xf32>
    %171 = vector.extract_strided_slice %168 {offsets = [0, 0], sizes = [8, 128], strides = [1, 1]} : vector<8x384xf32> to vector<8x128xf32>
    %172 = vector.extract_strided_slice %168 {offsets = [0, 128], sizes = [8, 128], strides = [1, 1]} : vector<8x384xf32> to vector<8x128xf32>
    %173 = vector.extract_strided_slice %168 {offsets = [0, 256], sizes = [8, 128], strides = [1, 1]} : vector<8x384xf32> to vector<8x128xf32>
    %174 = arith.mulf %172, %148 : vector<8x128xf32>
    %175 = arith.mulf %171, %170 : vector<8x128xf32>
    %176 = arith.addf %174, %175 : vector<8x128xf32>
    %177 = math.tanh %176 : vector<8x128xf32>
    %178 = arith.mulf %173, %177 : vector<8x128xf32>
    %179 = arith.truncf %178 : vector<8x128xf32> to vector<8x128xbf16>
    %180 = arith.index_cast %c5_i32 : i32 to index
    %c0_51 = arith.constant 0 : index
    %c0_52 = arith.constant 0 : index
    %181 = vector.load %arg12[%180, %c0_51, %c0_52] : memref<8x8x128xbf16, #tpu.memory_space<vmem>>, vector<1x8x128xbf16>
    %182 = vector.shape_cast %181 : vector<1x8x128xbf16> to vector<8x128xbf16>
    %183 = vector.shape_cast %179 : vector<8x128xbf16> to vector<1x8x128xbf16>
    tpu.vector_store %arg12[%180, %c0_51, %c0_52], %183 {strides = array<i32>} : memref<8x8x128xbf16, #tpu.memory_space<vmem>>, vector<1x8x128xbf16>,
    %c6_i32 = arith.constant 6 : i32
    %184 = arith.index_cast %c6_i32 : i32 to index
    %c0_53 = arith.constant 0 : index
    %c0_54 = arith.constant 0 : index
    %185 = vector.load %arg11[%184, %c0_53, %c0_54] : memref<8x8x512xbf16, #tpu.memory_space<vmem>>, vector<1x8x512xbf16>
    %186 = vector.shape_cast %185 : vector<1x8x512xbf16> to vector<8x512xbf16>
    %187 = arith.truncf %178 : vector<8x128xf32> to vector<8x128xbf16>
    %cst_55 = arith.constant dense<0.000000e+00> : vector<8x512xf32>
    %188 = tpu.matmul %187, %13, %cst_55 {dimension_numbers = #tpu.dot_dimension_numbers<[1], [0], [0], [1], [0, 0, 1, 1], [], []>} : vector<8x128xbf16>, vector<128x512xbf16>, vector<8x512xf32> -> vector<8x512xf32>
    %189 = arith.extf %186 : vector<8x512xbf16> to vector<8x512xf32>
    %190 = arith.addf %189, %188 : vector<8x512xf32>
    %191 = vector.extract_strided_slice %190 {offsets = [0, 0], sizes = [8, 384], strides = [1, 1]} : vector<8x512xf32> to vector<8x384xf32>
    %192 = arith.negf %191 : vector<8x384xf32>
    %193 = math.exp %192 : vector<8x384xf32>
    %cst_56 = arith.constant 1.000000e+00 : f32
    %194 = vector.broadcast %cst_56 : f32 to vector<8x384xf32>
    %195 = arith.addf %194, %193 : vector<8x384xf32>
    %196 = arith.divf %194, %195 : vector<8x384xf32>
    %197 = vector.extract_strided_slice %190 {offsets = [0, 384], sizes = [8, 128], strides = [1, 1]} : vector<8x512xf32> to vector<8x128xf32>
    %198 = math.tanh %197 : vector<8x128xf32>
    %199 = vector.extract_strided_slice %196 {offsets = [0, 0], sizes = [8, 128], strides = [1, 1]} : vector<8x384xf32> to vector<8x128xf32>
    %200 = vector.extract_strided_slice %196 {offsets = [0, 128], sizes = [8, 128], strides = [1, 1]} : vector<8x384xf32> to vector<8x128xf32>
    %201 = vector.extract_strided_slice %196 {offsets = [0, 256], sizes = [8, 128], strides = [1, 1]} : vector<8x384xf32> to vector<8x128xf32>
    %202 = arith.mulf %200, %176 : vector<8x128xf32>
    %203 = arith.mulf %199, %198 : vector<8x128xf32>
    %204 = arith.addf %202, %203 : vector<8x128xf32>
    %205 = math.tanh %204 : vector<8x128xf32>
    %206 = arith.mulf %201, %205 : vector<8x128xf32>
    %207 = arith.truncf %206 : vector<8x128xf32> to vector<8x128xbf16>
    %208 = arith.index_cast %c6_i32 : i32 to index
    %c0_57 = arith.constant 0 : index
    %c0_58 = arith.constant 0 : index
    %209 = vector.load %arg12[%208, %c0_57, %c0_58] : memref<8x8x128xbf16, #tpu.memory_space<vmem>>, vector<1x8x128xbf16>
    %210 = vector.shape_cast %209 : vector<1x8x128xbf16> to vector<8x128xbf16>
    %211 = vector.shape_cast %207 : vector<8x128xbf16> to vector<1x8x128xbf16>
    tpu.vector_store %arg12[%208, %c0_57, %c0_58], %211 {strides = array<i32>} : memref<8x8x128xbf16, #tpu.memory_space<vmem>>, vector<1x8x128xbf16>,
    %c7_i32 = arith.constant 7 : i32
    %212 = arith.index_cast %c7_i32 : i32 to index
    %c0_59 = arith.constant 0 : index
    %c0_60 = arith.constant 0 : index
    %213 = vector.load %arg11[%212, %c0_59, %c0_60] : memref<8x8x512xbf16, #tpu.memory_space<vmem>>, vector<1x8x512xbf16>
    %214 = vector.shape_cast %213 : vector<1x8x512xbf16> to vector<8x512xbf16>
    %215 = arith.truncf %206 : vector<8x128xf32> to vector<8x128xbf16>
    %cst_61 = arith.constant dense<0.000000e+00> : vector<8x512xf32>
    %216 = tpu.matmul %215, %13, %cst_61 {dimension_numbers = #tpu.dot_dimension_numbers<[1], [0], [0], [1], [0, 0, 1, 1], [], []>} : vector<8x128xbf16>, vector<128x512xbf16>, vector<8x512xf32> -> vector<8x512xf32>
    %217 = arith.extf %214 : vector<8x512xbf16> to vector<8x512xf32>
    %218 = arith.addf %217, %216 : vector<8x512xf32>
    %219 = vector.extract_strided_slice %218 {offsets = [0, 0], sizes = [8, 384], strides = [1, 1]} : vector<8x512xf32> to vector<8x384xf32>
    %220 = arith.negf %219 : vector<8x384xf32>
    %221 = math.exp %220 : vector<8x384xf32>
    %cst_62 = arith.constant 1.000000e+00 : f32
    %222 = vector.broadcast %cst_62 : f32 to vector<8x384xf32>
    %223 = arith.addf %222, %221 : vector<8x384xf32>
    %224 = arith.divf %222, %223 : vector<8x384xf32>
    %225 = vector.extract_strided_slice %218 {offsets = [0, 384], sizes = [8, 128], strides = [1, 1]} : vector<8x512xf32> to vector<8x128xf32>
    %226 = math.tanh %225 : vector<8x128xf32>
    %227 = vector.extract_strided_slice %224 {offsets = [0, 0], sizes = [8, 128], strides = [1, 1]} : vector<8x384xf32> to vector<8x128xf32>
    %228 = vector.extract_strided_slice %224 {offsets = [0, 128], sizes = [8, 128], strides = [1, 1]} : vector<8x384xf32> to vector<8x128xf32>
    %229 = vector.extract_strided_slice %224 {offsets = [0, 256], sizes = [8, 128], strides = [1, 1]} : vector<8x384xf32> to vector<8x128xf32>
    %230 = arith.mulf %228, %204 : vector<8x128xf32>
    %231 = arith.mulf %227, %226 : vector<8x128xf32>
    %232 = arith.addf %230, %231 : vector<8x128xf32>
    %233 = math.tanh %232 : vector<8x128xf32>
    %234 = arith.mulf %229, %233 : vector<8x128xf32>
    %235 = arith.truncf %234 : vector<8x128xf32> to vector<8x128xbf16>
    %236 = arith.index_cast %c7_i32 : i32 to index
    %c0_63 = arith.constant 0 : index
    %c0_64 = arith.constant 0 : index
    %237 = vector.load %arg12[%236, %c0_63, %c0_64] : memref<8x8x128xbf16, #tpu.memory_space<vmem>>, vector<1x8x128xbf16>
    %238 = vector.shape_cast %237 : vector<1x8x128xbf16> to vector<8x128xbf16>
    %239 = vector.shape_cast %235 : vector<8x128xbf16> to vector<1x8x128xbf16>
    tpu.vector_store %arg12[%236, %c0_63, %c0_64], %239 {strides = array<i32>} : memref<8x8x128xbf16, #tpu.memory_space<vmem>>, vector<1x8x128xbf16>,
    %c8_i32 = arith.constant 8 : i32
    %c0_65 = arith.constant 0 : index
    %c0_66 = arith.constant 0 : index
    %240 = vector.load %arg9[%c0_65, %c0_66] : memref<8x128xf32, #tpu.memory_space<vmem>>, vector<8x128xf32>
    tpu.vector_store %arg9[%c0_65, %c0_66], %234 {strides = array<i32>} : memref<8x128xf32, #tpu.memory_space<vmem>>, vector<8x128xf32>,
    %c0_67 = arith.constant 0 : index
    %c0_68 = arith.constant 0 : index
    %241 = vector.load %arg10[%c0_67, %c0_68] : memref<8x128xf32, #tpu.memory_space<vmem>>, vector<8x128xf32>
    tpu.vector_store %arg10[%c0_67, %c0_68], %232 {strides = array<i32>} : memref<8x128xf32, #tpu.memory_space<vmem>>, vector<8x128xf32>,
    %c0_69 = arith.constant 0 : index
    %c0_70 = arith.constant 0 : index
    %c0_71 = arith.constant 0 : index
    %242 = vector.load %arg12[%c0_69, %c0_70, %c0_71] : memref<8x8x128xbf16, #tpu.memory_space<vmem>>, vector<8x8x128xbf16>
    %243 = tpu.transpose %242, [1, 0, 2] : vector<8x8x128xbf16> -> vector<8x8x128xbf16>
    %244 = vector.shape_cast %243 : vector<8x8x128xbf16> to vector<64x128xbf16>
    %c0_72 = arith.constant 0 : index
    %c0_73 = arith.constant 0 : index
    %245 = vector.load %arg6[%c0_72, %c0_73] : memref<128x128xbf16, #tpu.memory_space<vmem>>, vector<128x128xbf16>
    %cst_74 = arith.constant dense<0.000000e+00> : vector<64x128xf32>
    %246 = tpu.matmul %244, %245, %cst_74 {dimension_numbers = #tpu.dot_dimension_numbers<[1], [0], [0], [1], [0, 0, 1, 1], [], []>} : vector<64x128xbf16>, vector<128x128xbf16>, vector<64x128xf32> -> vector<64x128xf32>
    %c0_75 = arith.constant 0 : index
    %c0_76 = arith.constant 0 : index
    %247 = vector.load %arg7[%c0_75, %c0_76] : memref<1x128xf32, #tpu.memory_space<vmem>>, vector<1x128xf32>
    %248 = vector.broadcast %247 : vector<1x128xf32> to vector<64x128xf32>
    %249 = arith.addf %246, %248 : vector<64x128xf32>
    %250 = vector.shape_cast %249 : vector<64x128xf32> to vector<8x8x128xf32>
    %c0_77 = arith.constant 0 : index
    %c0_78 = arith.constant 0 : index
    %c0_79 = arith.constant 0 : index
    %251 = vector.load %arg8[%c0_77, %c0_78, %c0_79] : memref<8x8x128xf32, #tpu.memory_space<vmem>>, vector<8x8x128xf32>
    tpu.vector_store %arg8[%c0_77, %c0_78, %c0_79], %250 {strides = array<i32>} : memref<8x8x128xf32, #tpu.memory_space<vmem>>, vector<8x8x128xf32>,
    return
  }
  func.func @transform_0(%arg0: i32, %arg1: i32) -> (i32, i32, i32) {
    %c0_i32 = arith.constant 0 : i32
    %c0_i32_0 = arith.constant 0 : i32
    return %arg1, %arg0, %c0_i32 : i32, i32, i32
  }
  func.func @transform_1(%arg0: i32, %arg1: i32) -> (i32, i32) {
    %c0_i32 = arith.constant 0 : i32
    %c0_i32_0 = arith.constant 0 : i32
    %c0_i32_1 = arith.constant 0 : i32
    return %c0_i32, %c0_i32_0 : i32, i32
  }
  func.func @transform_2(%arg0: i32, %arg1: i32) -> (i32, i32) {
    %c0_i32 = arith.constant 0 : i32
    %c0_i32_0 = arith.constant 0 : i32
    %c0_i32_1 = arith.constant 0 : i32
    return %c0_i32, %c0_i32_0 : i32, i32
  }
  func.func @transform_3(%arg0: i32, %arg1: i32) -> (i32, i32) {
    %c0_i32 = arith.constant 0 : i32
    %c0_i32_0 = arith.constant 0 : i32
    %c0_i32_1 = arith.constant 0 : i32
    return %c0_i32, %c0_i32_0 : i32, i32
  }
  func.func @transform_4(%arg0: i32, %arg1: i32) -> (i32, i32) {
    %c0_i32 = arith.constant 0 : i32
    %c0_i32_0 = arith.constant 0 : i32
    %c0_i32_1 = arith.constant 0 : i32
    return %c0_i32, %c0_i32_0 : i32, i32
  }
  func.func @transform_5(%arg0: i32, %arg1: i32) -> (i32, i32) {
    %c0_i32 = arith.constant 0 : i32
    %c0_i32_0 = arith.constant 0 : i32
    %c0_i32_1 = arith.constant 0 : i32
    return %c0_i32, %c0_i32_0 : i32, i32
  }
  func.func @transform_6(%arg0: i32, %arg1: i32) -> (i32, i32, i32) {
    %c0_i32 = arith.constant 0 : i32
    %c0_i32_0 = arith.constant 0 : i32
    return %arg0, %arg1, %c0_i32 : i32, i32, i32
  }
}

</mosaic_0001>

<llo_original>
// kernel: rnn_forward.1
$region0: #{rnn_forward.1}
  #allocation0 [shape = 'u32[]', space=smem, size = 0x4, offset = 0x4, fixed_abs, tag = 'smem constant byte address 0x4 - core index']
  #allocation1 [shape = 'u32[144,128]{1,0:T(1,128)}', space=vmem, size = 0x12000, scoped, tag = 'internal scratch']
  #allocation2 [shape = 'f32[8,128]{1,0:T(8,128)}', space=vmem, size = 0x1000, scoped, tag = 'scratch operand']
  #allocation3 [shape = 'f32[8,128]{1,0:T(8,128)}', space=vmem, size = 0x1000, scoped, tag = 'scratch operand']
  #allocation4 [shape = 'bf16[8,8,512]{2,1,0:T(8,128)(2,1)}', space=vmem, size = 0x10000, scoped, tag = 'scratch operand']
  #allocation5 [shape = 'bf16[8,8,128]{2,1,0:T(8,128)(2,1)}', space=vmem, size = 0x4000, scoped, tag = 'scratch operand']
  %s0 = inlined_call_operand.vmem [shape: bf16[16,8,32], index: 0, kind: input, shape index: {}]
  %s1 = inlined_call_operand.vmem [shape: bf16[32,512], index: 1, kind: input, shape index: {}]
  %s2 = inlined_call_operand.vmem [shape: bf16[128,512], index: 2, kind: input, shape index: {}]
  %s3 = inlined_call_operand.vmem [shape: f32[1,512], index: 3, kind: input, shape index: {}]
  %s4 = inlined_call_operand.vmem [shape: bf16[128,128], index: 4, kind: input, shape index: {}]
  %s5 = inlined_call_operand.vmem [shape: f32[1,128], index: 5, kind: input, shape index: {}]
  %s6 = inlined_call_operand.vmem [shape: f32[8,16,128], index: 6, kind: output, shape index: {}]
  %s7 = sld [smem:[#allocation0]]
  $region95: #{rnn_forward.1} parent=0
    _
  %s9 = ssub.s32 1, %s7
  %s10 = scalar_select 0, %s9, %s7
  $region1: #{rnn_forward.1} parent=0
    #allocation6 [shape = 'u8[65536]{0}', space=vmem, size = 0x10000, scoped, tag = 'output window, operand 0']
    loop: start=0, step=1, limit=4
    $region2: #{rnn_forward.1} parent=1 // loop_pre_header
      _
    $region3: #{rnn_forward.1} parent=1 // loop_header
      %s12 = sphi 0, %s16
      %p13 = scmp.ge.s32.totalorder %s12, 4
      %s19 = sphi 0, %s31
      %s20 = sphi 0, %s27
      %s21 = sphi 0, %s19
      %s22 = sphi 0, %s20
      %s23 = sphi 0, %s21
      %s24 = sphi 0, %s22
      %s36 = sphi 0, %s38
      %s39 = sphi 0, %s36
      %s40 = sphi 0, %s39
      %s56 = sphi 0, %s40
      %s60 = sphi 0, %s60
      %s62 = sphi 0, %s60
      %s63 = sphi 0, %s62
      %s77 = sphi 0, %s63
      %s81 = sphi 0, %s81
      %s83 = sphi 0, %s81
      %s84 = sphi 0, %s83
      %s98 = sphi 0, %s84
      %s102 = sphi 0, %s102
      %s104 = sphi 0, %s102
      %s105 = sphi 0, %s104
      %s119 = sphi 0, %s105
      %s123 = sphi 0, %s123
      %s125 = sphi 0, %s123
      %s126 = sphi 0, %s125
      %s140 = sphi 0, %s126
      %s144 = sphi 0, %s144
      %s146 = sphi 0, %s144
      %s147 = sphi 0, %s146
      %s161 = sphi 0, %s147
      %s169 = sphi 0, %s171
      %s172 = sphi 0, %s169
      %s173 = sphi 0, %s172
      %s189 = sphi 0, %s173
    $region4: #{rnn_forward.1} parent=1 // loop_header_branch
      %15 = sbr.rel (%p13) target = $region8
    $region5: #{rnn_forward.1} parent=1 // loop_body
      %s17 = ssub.s32 %s12, 1
      %s18 = ssub.s32 %s12, 2
      %s25 = sadd.s32 1, %s20
      %p26 = scmp.ge.s32.totalorder %s25, 2
      %s27 = scalar_select %p26, 0, %s25
      %s28 = sadd.s32 1, %s19
      %s29 = scalar_select %p26, %s28, %s19
      %p30 = scmp.ge.s32.totalorder %s29, 1
      %s31 = scalar_select %p30, 0, %s29
      %s32 = ssub.s32 %s20, %s27
      %s33 = ssub.s32 %s19, %s31
      %s34 = sor.u32 %s32, %s33
      %p35 = scmp.eq.s32.totalorder %s34, 0
      %s37 = sadd.s32 %s36, 1
      %s38 = scalar_select %p35, %s36, %s37
      %p41 = pneg %p35
      %p42 = scmp.eq.s32.totalorder %s12, 1
      %p43 = por %p41, %p42
      %p44 = scmp.ne.s32.totalorder %s36, %s39
      %p45 = scmp.eq.s32.totalorder %s12, 0
      %p46 = por %p44, %p45
      %p47 = scmp.ne.s32.totalorder %s36, %s39
      %p48 = scmp.eq.s32.totalorder %s17, 1
      %p49 = por %p47, %p48
      %p50 = scmp.ne.s32.totalorder %s39, %s40
      %p51 = scmp.eq.s32.totalorder %s17, 0
      %p52 = por %p50, %p51
      %p53 = scmp.ne.s32.totalorder %s39, %s40
      %p54 = scmp.eq.s32.totalorder %s18, 1
      %p55 = por %p53, %p54
      %p57 = scmp.ne.s32.totalorder %s40, %s56
      %p58 = scmp.eq.s32.totalorder %s18, 0
      %p59 = por %p57, %p58
      %s61 = sadd.s32 %s60, 1
      %p64 = scmp.eq.s32.totalorder %s12, 1
      %p65 = scmp.ne.s32.totalorder %s60, %s62
      %p66 = scmp.eq.s32.totalorder %s12, 0
      %p67 = por %p65, %p66
      %p68 = scmp.ne.s32.totalorder %s60, %s62
      %p69 = scmp.eq.s32.totalorder %s17, 1
      %p70 = por %p68, %p69
      %p71 = scmp.ne.s32.totalorder %s62, %s63
      %p72 = scmp.eq.s32.totalorder %s17, 0
      %p73 = por %p71, %p72
      %p74 = scmp.ne.s32.totalorder %s62, %s63
      %p75 = scmp.eq.s32.totalorder %s18, 1
      %p76 = por %p74, %p75
      %p78 = scmp.ne.s32.totalorder %s63, %s77
      %p79 = scmp.eq.s32.totalorder %s18, 0
      %p80 = por %p78, %p79
      %s82 = sadd.s32 %s81, 1
      %p85 = scmp.eq.s32.totalorder %s12, 1
      %p86 = scmp.ne.s32.totalorder %s81, %s83
      %p87 = scmp.eq.s32.totalorder %s12, 0
      %p88 = por %p86, %p87
      %p89 = scmp.ne.s32.totalorder %s81, %s83
      %p90 = scmp.eq.s32.totalorder %s17, 1
      %p91 = por %p89, %p90
      %p92 = scmp.ne.s32.totalorder %s83, %s84
      %p93 = scmp.eq.s32.totalorder %s17, 0
      %p94 = por %p92, %p93
      %p95 = scmp.ne.s32.totalorder %s83, %s84
      %p96 = scmp.eq.s32.totalorder %s18, 1
      %p97 = por %p95, %p96
      %p99 = scmp.ne.s32.totalorder %s84, %s98
      %p100 = scmp.eq.s32.totalorder %s18, 0
      %p101 = por %p99, %p100
      %s103 = sadd.s32 %s102, 1
      %p106 = scmp.eq.s32.totalorder %s12, 1
      %p107 = scmp.ne.s32.totalorder %s102, %s104
      %p108 = scmp.eq.s32.totalorder %s12, 0
      %p109 = por %p107, %p108
      %p110 = scmp.ne.s32.totalorder %s102, %s104
      %p111 = scmp.eq.s32.totalorder %s17, 1
      %p112 = por %p110, %p111
      %p113 = scmp.ne.s32.totalorder %s104, %s105
      %p114 = scmp.eq.s32.totalorder %s17, 0
      %p115 = por %p113, %p114
      %p116 = scmp.ne.s32.totalorder %s104, %s105
      %p117 = scmp.eq.s32.totalorder %s18, 1
      %p118 = por %p116, %p117
      %p120 = scmp.ne.s32.totalorder %s105, %s119
      %p121 = scmp.eq.s32.totalorder %s18, 0
      %p122 = por %p120, %p121
      %s124 = sadd.s32 %s123, 1
      %p127 = scmp.eq.s32.totalorder %s12, 1
      %p128 = scmp.ne.s32.totalorder %s123, %s125
      %p129 = scmp.eq.s32.totalorder %s12, 0
      %p130 = por %p128, %p129
      %p131 = scmp.ne.s32.totalorder %s123, %s125
      %p132 = scmp.eq.s32.totalorder %s17, 1
      %p133 = por %p131, %p132
      %p134 = scmp.ne.s32.totalorder %s125, %s126
      %p135 = scmp.eq.s32.totalorder %s17, 0
      %p136 = por %p134, %p135
      %p137 = scmp.ne.s32.totalorder %s125, %s126
      %p138 = scmp.eq.s32.totalorder %s18, 1
      %p139 = por %p137, %p138
      %p141 = scmp.ne.s32.totalorder %s126, %s140
      %p142 = scmp.eq.s32.totalorder %s18, 0
      %p143 = por %p141, %p142
      %s145 = sadd.s32 %s144, 1
      %p148 = scmp.eq.s32.totalorder %s12, 1
      %p149 = scmp.ne.s32.totalorder %s144, %s146
      %p150 = scmp.eq.s32.totalorder %s12, 0
      %p151 = por %p149, %p150
      %p152 = scmp.ne.s32.totalorder %s144, %s146
      %p153 = scmp.eq.s32.totalorder %s17, 1
      %p154 = por %p152, %p153
      %p155 = scmp.ne.s32.totalorder %s146, %s147
      %p156 = scmp.eq.s32.totalorder %s17, 0
      %p157 = por %p155, %p156
      %p158 = scmp.ne.s32.totalorder %s146, %s147
      %p159 = scmp.eq.s32.totalorder %s18, 1
      %p160 = por %p158, %p159
      %p162 = scmp.ne.s32.totalorder %s147, %s161
      %p163 = scmp.eq.s32.totalorder %s18, 0
      %p164 = por %p162, %p163
      %s165 = ssub.s32 %s19, %s31
      %s166 = ssub.s32 %s20, %s27
      %s167 = sor.u32 %s165, %s166
      %p168 = scmp.eq.s32.totalorder %s167, 0
      %s170 = sadd.s32 %s169, 1
      %s171 = scalar_select %p168, %s169, %s170
      %p174 = pneg %p168
      %p175 = scmp.eq.s32.totalorder %s12, 1
      %p176 = por %p174, %p175
      %p177 = scmp.ne.s32.totalorder %s169, %s172
      %p178 = scmp.eq.s32.totalorder %s12, 0
      %p179 = por %p177, %p178
      %p180 = scmp.ne.s32.totalorder %s169, %s172
      %p181 = scmp.eq.s32.totalorder %s17, 1
      %p182 = por %p180, %p181
      %p183 = scmp.ne.s32.totalorder %s172, %s173
      %p184 = scmp.eq.s32.totalorder %s17, 0
      %p185 = por %p183, %p184
      %p186 = scmp.ne.s32.totalorder %s172, %s173
      %p187 = scmp.eq.s32.totalorder %s18, 1
      %p188 = por %p186, %p187
      %p190 = scmp.ne.s32.totalorder %s173, %s189
      %p191 = scmp.eq.s32.totalorder %s18, 0
      %p192 = por %p190, %p191
      %p193 = scmp.le.s32.totalorder 1, %s12
      %p194 = scmp.lt.s32.totalorder %s12, 3
      %p195 = pnand %p193, %p194
      %p196 = pneg %p195
      // Predicated region
      $region9: #{rnn_forward.1} parent=5 // pred_check
        _
      $region10: #{rnn_forward.1} parent=5 // pred_check_branch
        %198 = sbr.rel (%p195) target = $region12
      $region11: #{rnn_forward.1} parent=5 // pred_region
        %s199 = ssub.s32 %s12, 1
        // Predicated region
        $region13: #{rnn_forward.1} parent=11 // pred_check
          %p200 = pneg %p73
        $region14: #{rnn_forward.1} parent=11 // pred_check_branch
          %202 = sbr.rel (%p200) target = $region16
        $region15: #{rnn_forward.1} parent=11 // pred_region
          _
        $region16: #{rnn_forward.1} parent=11 // pred_fallthru
          _
        // Predicated region
        $region17: #{rnn_forward.1} parent=11 // pred_check
          %p203 = pneg %p94
        $region18: #{rnn_forward.1} parent=11 // pred_check_branch
          %205 = sbr.rel (%p203) target = $region20
        $region19: #{rnn_forward.1} parent=11 // pred_region
          _
        $region20: #{rnn_forward.1} parent=11 // pred_fallthru
          _
        // Predicated region
        $region21: #{rnn_forward.1} parent=11 // pred_check
          %p206 = pneg %p115
        $region22: #{rnn_forward.1} parent=11 // pred_check_branch
          %208 = sbr.rel (%p206) target = $region24
        $region23: #{rnn_forward.1} parent=11 // pred_region
          _
        $region24: #{rnn_forward.1} parent=11 // pred_fallthru
          _
        // Predicated region
        $region25: #{rnn_forward.1} parent=11 // pred_check
          %p209 = pneg %p136
        $region26: #{rnn_forward.1} parent=11 // pred_check_branch
          %211 = sbr.rel (%p209) target = $region28
        $region27: #{rnn_forward.1} parent=11 // pred_region
          _
        $region28: #{rnn_forward.1} parent=11 // pred_fallthru
          _
        // Predicated region
        $region29: #{rnn_forward.1} parent=11 // pred_check
          %p212 = pneg %p157
        $region30: #{rnn_forward.1} parent=11 // pred_check_branch
          %214 = sbr.rel (%p212) target = $region32
        $region31: #{rnn_forward.1} parent=11 // pred_region
          _
        $region32: #{rnn_forward.1} parent=11 // pred_fallthru
          _
      $region12: #{rnn_forward.1} parent=5 // pred_fallthru
        _
      %p215 = scmp.lt.s32.totalorder %s12, 2
      // Predicated region
      $region33: #{rnn_forward.1} parent=5 // pred_check
        %p216 = pneg %p215
      $region34: #{rnn_forward.1} parent=5 // pred_check_branch
        %218 = sbr.rel (%p216) target = $region36
      $region35: #{rnn_forward.1} parent=5 // pred_region
        // Predicated region
        $region37: #{rnn_forward.1} parent=35 // pred_check
          %p219 = pneg %p46
        $region38: #{rnn_forward.1} parent=35 // pred_check_branch
          %221 = sbr.rel (%p219) target = $region40
        $region39: #{rnn_forward.1} parent=35 // pred_region
          %s222 = smul.u32 8, %s20
          %p223 = scmp.lt.s32.totalorder %s222, 15
          %s224 = scalar_select %p223, %s222, 15
          %p225 = scmp.lt.s32.totalorder %s19, 0
          %s226 = scalar_select %p225, %s19, 0
          %s227 = sadd.s32 %s226, %s224
          %s228 = smul.addr %s227, 4
          %s229 = scalar_lea.vmem %s0, %s228
          %s230 = smul.u32 8, %s20
        $region40: #{rnn_forward.1} parent=35 // pred_fallthru
          _
      $region36: #{rnn_forward.1} parent=5 // pred_fallthru
        _
      %p231 = scmp.le.s32.totalorder 1, %s12
      %p232 = scmp.lt.s32.totalorder %s12, 3
      %p233 = pnand %p231, %p232
      %p234 = pneg %p233
      // Predicated region
      $region41: #{rnn_forward.1} parent=5 // pred_check
        _
      $region42: #{rnn_forward.1} parent=5 // pred_check_branch
        %236 = sbr.rel (%p233) target = $region44
      $region43: #{rnn_forward.1} parent=5 // pred_region
        %s237 = ssub.s32 %s12, 1
        %s238 = smul.u32 8, %s22
        %p239 = scmp.lt.s32.totalorder %s238, 15
        %s240 = scalar_select %p239, %s238, 15
        %p241 = scmp.lt.s32.totalorder %s21, 0
        %s242 = scalar_select %p241, %s21, 0
        %s243 = sadd.s32 %s242, %s240
        %s244 = smul.addr %s243, 4
        %s245 = scalar_lea.vmem %s0, %s244
        %p246 = pneg %p52
        %p247 = pneg %p49
        %p248 = pneg %p73
        %p249 = pneg %p70
        %p250 = pneg %p94
        %p251 = pneg %p91
        %p252 = pneg %p115
        %p253 = pneg %p112
        %p254 = pneg %p136
        %p255 = pneg %p133
        %p256 = pneg %p157
        %p257 = pneg %p154
        %p258 = pneg %p185
        %p259 = pneg %p182
        %s260 = sand.u32 %s172, 1
        %s261 = sand.u32 %s172, 1
        %s262 = smul.addr %s261, 64
        %s263 = scalar_lea.vmem [#allocation6], %s262
        %s264 = smul.u32 8, %s22
        %p265 = scmp.lt.s32.totalorder %s264, 15
        %s266 = scalar_select %p265, %s264, 15
        %p267 = scmp.lt.s32.totalorder %s21, 0
        %s268 = scalar_select %p267, %s21, 0
        %s269 = sadd.s32 %s268, %s266
        %s270 = smul.addr %s269, 4
        %s271 = scalar_lea.vmem %s0, %s270
        %s272 = smul.u32 8, %s22
        %s273 = smul.u32 8, %s21
        %p275 = scmp.eq.s32.totalorder %s22, 0
        // Predicated region
        $region45: #{rnn_forward.1} parent=43 // pred_check
          %p276 = pneg %p275
        $region46: #{rnn_forward.1} parent=43 // pred_check_branch
          %278 = sbr.rel (%p276) target = $region48
        $region47: #{rnn_forward.1} parent=43 // pred_region
          %279 = vst [vmem:[#allocation2] sm:$0xff] 0.0
          %280 = vst [vmem:[#allocation3] sm:$0xff] 0.0
        $region48: #{rnn_forward.1} parent=43 // pred_fallthru
          _
        %v281 = vld [vmem:[%s271] sm:$0xf]
        %v282 = vld [vmem:[%s271 + $0x4] sm:$0xf]
        %v283 = vld [vmem:[%s271 + $0x8] sm:$0xf]
        %v284 = vld [vmem:[%s271 + $0xc] sm:$0xf]
        %v285 = vld [vmem:[%s271 + $0x10] sm:$0xf]
        %v286 = vld [vmem:[%s271 + $0x14] sm:$0xf]
        %v287 = vld [vmem:[%s271 + $0x18] sm:$0xf]
        %v288 = vld [vmem:[%s271 + $0x1c] sm:$0xf]
        %v289 = vld [vmem:[%s1] sm:$0xff]
        %v290 = vld [vmem:[%s1 + $0x8] sm:$0xff]
        %v291 = vld [vmem:[%s1 + $0x10] sm:$0xff]
        %v292 = vld [vmem:[%s1 + $0x18] sm:$0xff]
        %v293 = vld [vmem:[%s1 + $0x20] sm:$0xff]
        %v294 = vld [vmem:[%s1 + $0x28] sm:$0xff]
        %v295 = vld [vmem:[%s1 + $0x30] sm:$0xff]
        %v296 = vld [vmem:[%s1 + $0x38] sm:$0xff]
        %v297 = vld [vmem:[%s3] sm:$0xf]
        %v299 = vlaneseq
        %v300 = vshrl.u32 %v299, 7
        %v301 = vsub.s32 0, %v300
        %v302 = vrot.slane %v297, %v301
        %v303 = vlaneseq
        %v304 = vshrl.u32 %v303, 7
        %v305 = vsub.s32 1, %v304
        %v306 = vrot.slane %v297, %v305
        %v307 = vlaneseq
        %v308 = vshrl.u32 %v307, 7
        %v309 = vsub.s32 2, %v308
        %v310 = vrot.slane %v297, %v309
        %v311 = vlaneseq
        %v312 = vshrl.u32 %v311, 7
        %v313 = vsub.s32 3, %v312
        %v314 = vrot.slane %v297, %v313
        %v327 = vunpack.c.l.b16 %v281
        %v328 = vunpack.c.l.b16 %v282
        %v329 = vunpack.c.l.b16 %v283
        %v330 = vunpack.c.l.b16 %v284
        %v331 = vunpack.c.l.b16 %v285
        %v332 = vunpack.c.l.b16 %v286
        %v333 = vunpack.c.l.b16 %v287
        %v334 = vunpack.c.l.b16 %v288
        %v335 = vpack.c.b16 %v328, %v327
        %v336 = vpack.c.b16 %v330, %v329
        %v337 = vpack.c.b16 %v332, %v331
        %v338 = vpack.c.b16 %v334, %v333
        %v347 = vunpack.c.l.b16 %v289
        %v348 = vunpack.c.h.b16 %v289
        %v349 = vunpack.c.l.b16 %v290
        %v350 = vunpack.c.h.b16 %v290
        %v351 = vunpack.c.l.b16 %v291
        %v352 = vunpack.c.h.b16 %v291
        %v353 = vunpack.c.l.b16 %v292
        %v354 = vunpack.c.h.b16 %v292
        %v355 = vunpack.c.l.b16 %v293
        %v356 = vunpack.c.h.b16 %v293
        %v357 = vunpack.c.l.b16 %v294
        %v358 = vunpack.c.h.b16 %v294
        %v359 = vunpack.c.l.b16 %v295
        %v360 = vunpack.c.h.b16 %v295
        %v361 = vunpack.c.l.b16 %v296
        %v362 = vunpack.c.h.b16 %v296
        %v363 = vpack.c.b16 %v351, %v347
        %v364 = vpack.c.b16 %v352, %v348
        %v365 = vpack.c.b16 %v353, %v349
        %v366 = vpack.c.b16 %v354, %v350
        %v367 = vpack.c.b16 %v359, %v355
        %v368 = vpack.c.b16 %v360, %v356
        %v369 = vpack.c.b16 %v361, %v357
        %v370 = vpack.c.b16 %v362, %v358
        %vm379 = vcmask 261120
        %v381 = vsel %vm379, %v335, 0
        %v384 = vsel %vm379, %v336, 0
        %v387 = vsel %vm379, %v337, 0
        %v390 = vsel %vm379, %v338, 0
        %392 = vmatprep.subr.bf16.mxu0 0
        %393 = vmatpush1.bf16.msra.mxu0 0
        %394 = vmatprep.subr.bf16.mxu0 0
        %395 = vmatpush1.bf16.msra.mxu0 0
        %396 = vmatprep.subr.bf16.mxu0 0
        %397 = vmatpush1.bf16.msra.mxu0 0
        %398 = vmatprep.subr.bf16.mxu0 0
        %399 = vmatpush1.bf16.msra.mxu0 0
        %400 = vmatprep.subr.bf16.mxu0 0
        %401 = vmatpush1.bf16.msra.mxu0 0
        %402 = vmatprep.subr.bf16.mxu0 0
        %403 = vmatpush1.bf16.msra.mxu0 0
        %404 = vmatprep.subr.bf16.mxu0 %v368
        %405 = vmatpush1.bf16.msra.mxu0 %v367
        %406 = vmatprep.subr.bf16.mxu0 %v364
        %407 = vmatpush1.bf16.msra.mxu0 %v363
        %408 = vmatprep.subr.bf16.mxu0 0
        %409 = vmatpush2.bf16.msra.mxu0 0
        %410 = vmatprep.subr.bf16.mxu0 0
        %411 = vmatpush2.bf16.msra.mxu0 0
        %412 = vmatprep.subr.bf16.mxu0 0
        %413 = vmatpush2.bf16.msra.mxu0 0
        %414 = vmatprep.subr.bf16.mxu0 0
        %415 = vmatpush2.bf16.msra.mxu0 0
        %416 = vmatprep.subr.bf16.mxu0 0
        %417 = vmatpush2.bf16.msra.mxu0 0
        %418 = vmatprep.subr.bf16.mxu0 0
        %419 = vmatpush2.bf16.msra.mxu0 0
        %420 = vmatprep.subr.bf16.mxu0 0
        %421 = vmatpush2.bf16.msra.mxu0 0
        %422 = vmatprep.subr.bf16.mxu0 0
        %423 = vmatpush2.bf16.msra.mxu0 0
        %424 = vmatprep.mubr.bf16.mxu0 0
        %425 = vmatmul.mubr.bf16.gmra.mxu0 %v381
        %v426 = vpop.f32.mrf.mxu0
        %v427 = vadd.f32 %v302, %v426
        %v428 = vpop.f32.mrf.mxu0
        %v429 = vadd.f32 %v306, %v428
        %v430 = vpop.f32.mrf.mxu0
        %v431 = vadd.f32 %v302, %v430
        %v432 = vpop.f32.mrf.mxu0
        %v433 = vadd.f32 %v306, %v432
        %434 = vmatprep.mubr.bf16.mxu0 0
        %435 = vmatmul.mubr.bf16.gmra.mxu0 %v384
        %v436 = vpop.f32.mrf.mxu0
        %v437 = vadd.f32 %v302, %v436
        %v438 = vpop.f32.mrf.mxu0
        %v439 = vadd.f32 %v306, %v438
        %v440 = vpop.f32.mrf.mxu0
        %v441 = vadd.f32 %v302, %v440
        %v442 = vpop.f32.mrf.mxu0
        %v443 = vadd.f32 %v306, %v442
        %444 = vmatprep.mubr.bf16.mxu0 0
        %445 = vmatmul.mubr.bf16.gmra.mxu0 %v387
        %v446 = vpop.f32.mrf.mxu0
        %v447 = vadd.f32 %v302, %v446
        %v448 = vpop.f32.mrf.mxu0
        %v449 = vadd.f32 %v306, %v448
        %v450 = vpop.f32.mrf.mxu0
        %v451 = vadd.f32 %v302, %v450
        %v452 = vpop.f32.mrf.mxu0
        %v453 = vadd.f32 %v306, %v452
        %454 = vmatprep.mubr.bf16.mxu0 0
        %455 = vmatmul.mubr.bf16.gmra.mxu0 %v390
        %v456 = vpop.f32.mrf.mxu0
        %v457 = vadd.f32 %v302, %v456
        %v458 = vpop.f32.mrf.mxu0
        %v459 = vadd.f32 %v306, %v458
        %v460 = vpop.f32.mrf.mxu0
        %v461 = vadd.f32 %v302, %v460
        %v462 = vpop.f32.mrf.mxu0
        %v463 = vadd.f32 %v306, %v462
        %464 = vdwg.mxu0
        %465 = vmatprep.subr.bf16.mxu0 0
        %466 = vmatpush1.bf16.msra.mxu0 0
        %467 = vmatprep.subr.bf16.mxu0 0
        %468 = vmatpush1.bf16.msra.mxu0 0
        %469 = vmatprep.subr.bf16.mxu0 0
        %470 = vmatpush1.bf16.msra.mxu0 0
        %471 = vmatprep.subr.bf16.mxu0 0
        %472 = vmatpush1.bf16.msra.mxu0 0
        %473 = vmatprep.subr.bf16.mxu0 0
        %474 = vmatpush1.bf16.msra.mxu0 0
        %475 = vmatprep.subr.bf16.mxu0 0
        %476 = vmatpush1.bf16.msra.mxu0 0
        %477 = vmatprep.subr.bf16.mxu0 %v370
        %478 = vmatpush1.bf16.msra.mxu0 %v369
        %479 = vmatprep.subr.bf16.mxu0 %v366
        %480 = vmatpush1.bf16.msra.mxu0 %v365
        %481 = vmatprep.subr.bf16.mxu0 0
        %482 = vmatpush2.bf16.msra.mxu0 0
        %483 = vmatprep.subr.bf16.mxu0 0
        %484 = vmatpush2.bf16.msra.mxu0 0
        %485 = vmatprep.subr.bf16.mxu0 0
        %486 = vmatpush2.bf16.msra.mxu0 0
        %487 = vmatprep.subr.bf16.mxu0 0
        %488 = vmatpush2.bf16.msra.mxu0 0
        %489 = vmatprep.subr.bf16.mxu0 0
        %490 = vmatpush2.bf16.msra.mxu0 0
        %491 = vmatprep.subr.bf16.mxu0 0
        %492 = vmatpush2.bf16.msra.mxu0 0
        %493 = vmatprep.subr.bf16.mxu0 0
        %494 = vmatpush2.bf16.msra.mxu0 0
        %495 = vmatprep.subr.bf16.mxu0 0
        %496 = vmatpush2.bf16.msra.mxu0 0
        %497 = vmatprep.mubr.bf16.mxu0 0
        %498 = vmatmul.mubr.bf16.gmra.mxu0 %v381
        %v499 = vpop.f32.mrf.mxu0
        %v500 = vadd.f32 %v310, %v499
        %v501 = vpop.f32.mrf.mxu0
        %v502 = vadd.f32 %v314, %v501
        %v503 = vpop.f32.mrf.mxu0
        %v504 = vadd.f32 %v310, %v503
        %v505 = vpop.f32.mrf.mxu0
        %v506 = vadd.f32 %v314, %v505
        %507 = vmatprep.mubr.bf16.mxu0 0
        %508 = vmatmul.mubr.bf16.gmra.mxu0 %v384
        %v509 = vpop.f32.mrf.mxu0
        %v510 = vadd.f32 %v310, %v509
        %v511 = vpop.f32.mrf.mxu0
        %v512 = vadd.f32 %v314, %v511
        %v513 = vpop.f32.mrf.mxu0
        %v514 = vadd.f32 %v310, %v513
        %v515 = vpop.f32.mrf.mxu0
        %v516 = vadd.f32 %v314, %v515
        %517 = vmatprep.mubr.bf16.mxu0 0
        %518 = vmatmul.mubr.bf16.gmra.mxu0 %v387
        %v519 = vpop.f32.mrf.mxu0
        %v520 = vadd.f32 %v310, %v519
        %v521 = vpop.f32.mrf.mxu0
        %v522 = vadd.f32 %v314, %v521
        %v523 = vpop.f32.mrf.mxu0
        %v524 = vadd.f32 %v310, %v523
        %v525 = vpop.f32.mrf.mxu0
        %v526 = vadd.f32 %v314, %v525
        %527 = vmatprep.mubr.bf16.mxu0 0
        %528 = vmatmul.mubr.bf16.gmra.mxu0 %v390
        %v529 = vpop.f32.mrf.mxu0
        %v530 = vadd.f32 %v310, %v529
        %v531 = vpop.f32.mrf.mxu0
        %v532 = vadd.f32 %v314, %v531
        %v533 = vpop.f32.mrf.mxu0
        %v534 = vadd.f32 %v310, %v533
        %v535 = vpop.f32.mrf.mxu0
        %v536 = vadd.f32 %v314, %v535
        %537 = vdwg.mxu0
        %v538 = vpack.c.bf16 %v427, %v427
        %v539 = vpack.c.bf16 %v429, %v429
        %v540 = vpack.c.bf16 %v500, %v500
        %v541 = vpack.c.bf16 %v502, %v502
        %v542 = vpack.c.bf16 %v431, %v431
        %v543 = vpack.c.bf16 %v433, %v433
        %v544 = vpack.c.bf16 %v504, %v504
        %v545 = vpack.c.bf16 %v506, %v506
        %v546 = vpack.c.bf16 %v437, %v437
        %v547 = vpack.c.bf16 %v439, %v439
        %v548 = vpack.c.bf16 %v510, %v510
        %v549 = vpack.c.bf16 %v512, %v512
        %v550 = vpack.c.bf16 %v441, %v441
        %v551 = vpack.c.bf16 %v443, %v443
        %v552 = vpack.c.bf16 %v514, %v514
        %v553 = vpack.c.bf16 %v516, %v516
        %v554 = vpack.c.bf16 %v447, %v447
        %v555 = vpack.c.bf16 %v449, %v449
        %v556 = vpack.c.bf16 %v520, %v520
        %v557 = vpack.c.bf16 %v522, %v522
        %v558 = vpack.c.bf16 %v451, %v451
        %v559 = vpack.c.bf16 %v453, %v453
        %v560 = vpack.c.bf16 %v524, %v524
        %v561 = vpack.c.bf16 %v526, %v526
        %v562 = vpack.c.bf16 %v457, %v457
        %v563 = vpack.c.bf16 %v459, %v459
        %v564 = vpack.c.bf16 %v530, %v530
        %v565 = vpack.c.bf16 %v532, %v532
        %v566 = vpack.c.bf16 %v461, %v461
        %v567 = vpack.c.bf16 %v463, %v463
        %v568 = vpack.c.bf16 %v534, %v534
        %v569 = vpack.c.bf16 %v536, %v536
        %v602 = vunpack.c.l.b16 %v538
        %v603 = vunpack.c.l.b16 %v539
        %v604 = vunpack.c.l.b16 %v540
        %v605 = vunpack.c.l.b16 %v541
        %v606 = vunpack.c.l.b16 %v542
        %v607 = vunpack.c.l.b16 %v543
        %v608 = vunpack.c.l.b16 %v544
        %v609 = vunpack.c.l.b16 %v545
        %v610 = vunpack.c.l.b16 %v546
        %v611 = vunpack.c.l.b16 %v547
        %v612 = vunpack.c.l.b16 %v548
        %v613 = vunpack.c.l.b16 %v549
        %v614 = vunpack.c.l.b16 %v550
        %v615 = vunpack.c.l.b16 %v551
        %v616 = vunpack.c.l.b16 %v552
        %v617 = vunpack.c.l.b16 %v553
        %v618 = vunpack.c.l.b16 %v554
        %v619 = vunpack.c.l.b16 %v555
        %v620 = vunpack.c.l.b16 %v556
        %v621 = vunpack.c.l.b16 %v557
        %v622 = vunpack.c.l.b16 %v558
        %v623 = vunpack.c.l.b16 %v559
        %v624 = vunpack.c.l.b16 %v560
        %v625 = vunpack.c.l.b16 %v561
        %v626 = vunpack.c.l.b16 %v562
        %v627 = vunpack.c.l.b16 %v563
        %v628 = vunpack.c.l.b16 %v564
        %v629 = vunpack.c.l.b16 %v565
        %v630 = vunpack.c.l.b16 %v566
        %v631 = vunpack.c.l.b16 %v567
        %v632 = vunpack.c.l.b16 %v568
        %v633 = vunpack.c.l.b16 %v569
        %v634 = vpack.c.b16 %v603, %v602
        %v635 = vpack.c.b16 %v605, %v604
        %v636 = vpack.c.b16 %v607, %v606
        %v637 = vpack.c.b16 %v609, %v608
        %v638 = vpack.c.b16 %v611, %v610
        %v639 = vpack.c.b16 %v613, %v612
        %v640 = vpack.c.b16 %v615, %v614
        %v641 = vpack.c.b16 %v617, %v616
        %v642 = vpack.c.b16 %v619, %v618
        %v643 = vpack.c.b16 %v621, %v620
        %v644 = vpack.c.b16 %v623, %v622
        %v645 = vpack.c.b16 %v625, %v624
        %v646 = vpack.c.b16 %v627, %v626
        %v647 = vpack.c.b16 %v629, %v628
        %v648 = vpack.c.b16 %v631, %v630
        %v649 = vpack.c.b16 %v633, %v632
        %666 = vst [vmem:[#allocation4] sm:$0xff] %v634
        %667 = vst [vmem:[#allocation4 + $0x8] sm:$0xff] %v635
        %668 = vst [vmem:[#allocation4 + $0x10] sm:$0xff] %v636
        %669 = vst [vmem:[#allocation4 + $0x18] sm:$0xff] %v637
        %670 = vst [vmem:[#allocation4 + $0x20] sm:$0xff] %v638
        %671 = vst [vmem:[#allocation4 + $0x28] sm:$0xff] %v639
        %672 = vst [vmem:[#allocation4 + $0x30] sm:$0xff] %v640
        %673 = vst [vmem:[#allocation4 + $0x38] sm:$0xff] %v641
        %674 = vst [vmem:[#allocation4 + $0x40] sm:$0xff] %v642
        %675 = vst [vmem:[#allocation4 + $0x48] sm:$0xff] %v643
        %676 = vst [vmem:[#allocation4 + $0x50] sm:$0xff] %v644
        %677 = vst [vmem:[#allocation4 + $0x58] sm:$0xff] %v645
        %678 = vst [vmem:[#allocation4 + $0x60] sm:$0xff] %v646
        %679 = vst [vmem:[#allocation4 + $0x68] sm:$0xff] %v647
        %680 = vst [vmem:[#allocation4 + $0x70] sm:$0xff] %v648
        %681 = vst [vmem:[#allocation4 + $0x78] sm:$0xff] %v649
        %v682 = vld [vmem:[%s2] sm:$0xff]
        %v683 = vld [vmem:[%s2 + $0x8] sm:$0xff]
        %v684 = vld [vmem:[%s2 + $0x10] sm:$0xff]
        %v685 = vld [vmem:[%s2 + $0x18] sm:$0xff]
        %v686 = vld [vmem:[%s2 + $0x20] sm:$0xff]
        %v687 = vld [vmem:[%s2 + $0x28] sm:$0xff]
        %v688 = vld [vmem:[%s2 + $0x30] sm:$0xff]
        %v689 = vld [vmem:[%s2 + $0x38] sm:$0xff]
        %v690 = vld [vmem:[%s2 + $0x40] sm:$0xff]
        %v691 = vld [vmem:[%s2 + $0x48] sm:$0xff]
        %v692 = vld [vmem:[%s2 + $0x50] sm:$0xff]
        %v693 = vld [vmem:[%s2 + $0x58] sm:$0xff]
        %v694 = vld [vmem:[%s2 + $0x60] sm:$0xff]
        %v695 = vld [vmem:[%s2 + $0x68] sm:$0xff]
        %v696 = vld [vmem:[%s2 + $0x70] sm:$0xff]
        %v697 = vld [vmem:[%s2 + $0x78] sm:$0xff]
        %v698 = vld [vmem:[%s2 + $0x80] sm:$0xff]
        %v699 = vld [vmem:[%s2 + $0x88] sm:$0xff]
        %v700 = vld [vmem:[%s2 + $0x90] sm:$0xff]
        %v701 = vld [vmem:[%s2 + $0x98] sm:$0xff]
        %v702 = vld [vmem:[%s2 + $0xa0] sm:$0xff]
        %v703 = vld [vmem:[%s2 + $0xa8] sm:$0xff]
        %v704 = vld [vmem:[%s2 + $0xb0] sm:$0xff]
        %v705 = vld [vmem:[%s2 + $0xb8] sm:$0xff]
        %v706 = vld [vmem:[%s2 + $0xc0] sm:$0xff]
        %v707 = vld [vmem:[%s2 + $0xc8] sm:$0xff]
        %v708 = vld [vmem:[%s2 + $0xd0] sm:$0xff]
        %v709 = vld [vmem:[%s2 + $0xd8] sm:$0xff]
        %v710 = vld [vmem:[%s2 + $0xe0] sm:$0xff]
        %v711 = vld [vmem:[%s2 + $0xe8] sm:$0xff]
        %v712 = vld [vmem:[%s2 + $0xf0] sm:$0xff]
        %v713 = vld [vmem:[%s2 + $0xf8] sm:$0xff]
        %v714 = vld [vmem:[#allocation2] sm:$0xff]
        %v715 = vld [vmem:[#allocation3] sm:$0xff]
        %v716 = vld [vmem:[#allocation4] sm:$0xff]
        %v717 = vld [vmem:[#allocation4 + $0x8] sm:$0xff]
        %v718 = vpack.c.bf16 %v714, %v714
        %v751 = vunpack.c.l.b16 %v682
        %v752 = vunpack.c.h.b16 %v682
        %v753 = vunpack.c.l.b16 %v683
        %v754 = vunpack.c.h.b16 %v683
        %v755 = vunpack.c.l.b16 %v684
        %v756 = vunpack.c.h.b16 %v684
        %v757 = vunpack.c.l.b16 %v685
        %v758 = vunpack.c.h.b16 %v685
        %v759 = vunpack.c.l.b16 %v686
        %v760 = vunpack.c.h.b16 %v686
        %v761 = vunpack.c.l.b16 %v687
        %v762 = vunpack.c.h.b16 %v687
        %v763 = vunpack.c.l.b16 %v688
        %v764 = vunpack.c.h.b16 %v688
        %v765 = vunpack.c.l.b16 %v689
        %v766 = vunpack.c.h.b16 %v689
        %v767 = vunpack.c.l.b16 %v690
        %v768 = vunpack.c.h.b16 %v690
        %v769 = vunpack.c.l.b16 %v691
        %v770 = vunpack.c.h.b16 %v691
        %v771 = vunpack.c.l.b16 %v692
        %v772 = vunpack.c.h.b16 %v692
        %v773 = vunpack.c.l.b16 %v693
        %v774 = vunpack.c.h.b16 %v693
        %v775 = vunpack.c.l.b16 %v694
        %v776 = vunpack.c.h.b16 %v694
        %v777 = vunpack.c.l.b16 %v695
        %v778 = vunpack.c.h.b16 %v695
        %v779 = vunpack.c.l.b16 %v696
        %v780 = vunpack.c.h.b16 %v696
        %v781 = vunpack.c.l.b16 %v697
        %v782 = vunpack.c.h.b16 %v697
        %v783 = vunpack.c.l.b16 %v698
        %v784 = vunpack.c.h.b16 %v698
        %v785 = vunpack.c.l.b16 %v699
        %v786 = vunpack.c.h.b16 %v699
        %v787 = vunpack.c.l.b16 %v700
        %v788 = vunpack.c.h.b16 %v700
        %v789 = vunpack.c.l.b16 %v701
        %v790 = vunpack.c.h.b16 %v701
        %v791 = vunpack.c.l.b16 %v702
        %v792 = vunpack.c.h.b16 %v702
        %v793 = vunpack.c.l.b16 %v703
        %v794 = vunpack.c.h.b16 %v703
        %v795 = vunpack.c.l.b16 %v704
        %v796 = vunpack.c.h.b16 %v704
        %v797 = vunpack.c.l.b16 %v705
        %v798 = vunpack.c.h.b16 %v705
        %v799 = vunpack.c.l.b16 %v706
        %v800 = vunpack.c.h.b16 %v706
        %v801 = vunpack.c.l.b16 %v707
        %v802 = vunpack.c.h.b16 %v707
        %v803 = vunpack.c.l.b16 %v708
        %v804 = vunpack.c.h.b16 %v708
        %v805 = vunpack.c.l.b16 %v709
        %v806 = vunpack.c.h.b16 %v709
        %v807 = vunpack.c.l.b16 %v710
        %v808 = vunpack.c.h.b16 %v710
        %v809 = vunpack.c.l.b16 %v711
        %v810 = vunpack.c.h.b16 %v711
        %v811 = vunpack.c.l.b16 %v712
        %v812 = vunpack.c.h.b16 %v712
        %v813 = vunpack.c.l.b16 %v713
        %v814 = vunpack.c.h.b16 %v713
        %v815 = vpack.c.b16 %v755, %v751
        %v816 = vpack.c.b16 %v756, %v752
        %v817 = vpack.c.b16 %v757, %v753
        %v818 = vpack.c.b16 %v758, %v754
        %v819 = vpack.c.b16 %v763, %v759
        %v820 = vpack.c.b16 %v764, %v760
        %v821 = vpack.c.b16 %v765, %v761
        %v822 = vpack.c.b16 %v766, %v762
        %v823 = vpack.c.b16 %v771, %v767
        %v824 = vpack.c.b16 %v772, %v768
        %v825 = vpack.c.b16 %v773, %v769
        %v826 = vpack.c.b16 %v774, %v770
        %v827 = vpack.c.b16 %v779, %v775
        %v828 = vpack.c.b16 %v780, %v776
        %v829 = vpack.c.b16 %v781, %v777
        %v830 = vpack.c.b16 %v782, %v778
        %v831 = vpack.c.b16 %v787, %v783
        %v832 = vpack.c.b16 %v788, %v784
        %v833 = vpack.c.b16 %v789, %v785
        %v834 = vpack.c.b16 %v790, %v786
        %v835 = vpack.c.b16 %v795, %v791
        %v836 = vpack.c.b16 %v796, %v792
        %v837 = vpack.c.b16 %v797, %v793
        %v838 = vpack.c.b16 %v798, %v794
        %v839 = vpack.c.b16 %v803, %v799
        %v840 = vpack.c.b16 %v804, %v800
        %v841 = vpack.c.b16 %v805, %v801
        %v842 = vpack.c.b16 %v806, %v802
        %v843 = vpack.c.b16 %v811, %v807
        %v844 = vpack.c.b16 %v812, %v808
        %v845 = vpack.c.b16 %v813, %v809
        %v846 = vpack.c.b16 %v814, %v810
        %879 = vmatprep.subr.bf16.mxu0 %v844
        %880 = vmatpush1.bf16.msra.mxu0 %v843
        %881 = vmatprep.subr.bf16.mxu0 %v840
        %882 = vmatpush1.bf16.msra.mxu0 %v839
        %883 = vmatprep.subr.bf16.mxu0 %v836
        %884 = vmatpush1.bf16.msra.mxu0 %v835
        %885 = vmatprep.subr.bf16.mxu0 %v832
        %886 = vmatpush1.bf16.msra.mxu0 %v831
        %887 = vmatprep.subr.bf16.mxu0 %v828
        %888 = vmatpush1.bf16.msra.mxu0 %v827
        %889 = vmatprep.subr.bf16.mxu0 %v824
        %890 = vmatpush1.bf16.msra.mxu0 %v823
        %891 = vmatprep.subr.bf16.mxu0 %v820
        %892 = vmatpush1.bf16.msra.mxu0 %v819
        %893 = vmatprep.subr.bf16.mxu0 %v816
        %894 = vmatpush1.bf16.msra.mxu0 %v815
        %895 = vmatprep.subr.bf16.mxu0 0
        %896 = vmatpush2.bf16.msra.mxu0 0
        %897 = vmatprep.subr.bf16.mxu0 0
        %898 = vmatpush2.bf16.msra.mxu0 0
        %899 = vmatprep.subr.bf16.mxu0 0
        %900 = vmatpush2.bf16.msra.mxu0 0
        %901 = vmatprep.subr.bf16.mxu0 0
        %902 = vmatpush2.bf16.msra.mxu0 0
        %903 = vmatprep.subr.bf16.mxu0 0
        %904 = vmatpush2.bf16.msra.mxu0 0
        %905 = vmatprep.subr.bf16.mxu0 0
        %906 = vmatpush2.bf16.msra.mxu0 0
        %907 = vmatprep.subr.bf16.mxu0 0
        %908 = vmatpush2.bf16.msra.mxu0 0
        %909 = vmatprep.subr.bf16.mxu0 0
        %910 = vmatpush2.bf16.msra.mxu0 0
        %911 = vmatprep.mubr.bf16.mxu0 0
        %912 = vmatmul.mubr.bf16.gmra.mxu0 %v718
        %v913 = vpop.f32.mrf.mxu0
        %v914 = vadd.f32 0.0, %v913
        %v915 = vpop.f32.mrf.mxu0
        %v916 = vadd.f32 0.0, %v915
        %v917 = vpop.f32.mrf.mxu0
        %v918 = vpop.f32.mrf.mxu0
        %919 = vdwg.mxu0
        %920 = vmatprep.subr.bf16.mxu0 %v846
        %921 = vmatpush1.bf16.msra.mxu0 %v845
        %922 = vmatprep.subr.bf16.mxu0 %v842
        %923 = vmatpush1.bf16.msra.mxu0 %v841
        %924 = vmatprep.subr.bf16.mxu0 %v838
        %925 = vmatpush1.bf16.msra.mxu0 %v837
        %926 = vmatprep.subr.bf16.mxu0 %v834
        %927 = vmatpush1.bf16.msra.mxu0 %v833
        %928 = vmatprep.subr.bf16.mxu0 %v830
        %929 = vmatpush1.bf16.msra.mxu0 %v829
        %930 = vmatprep.subr.bf16.mxu0 %v826
        %931 = vmatpush1.bf16.msra.mxu0 %v825
        %932 = vmatprep.subr.bf16.mxu0 %v822
        %933 = vmatpush1.bf16.msra.mxu0 %v821
        %934 = vmatprep.subr.bf16.mxu0 %v818
        %935 = vmatpush1.bf16.msra.mxu0 %v817
        %936 = vmatprep.subr.bf16.mxu0 0
        %937 = vmatpush2.bf16.msra.mxu0 0
        %938 = vmatprep.subr.bf16.mxu0 0
        %939 = vmatpush2.bf16.msra.mxu0 0
        %940 = vmatprep.subr.bf16.mxu0 0
        %941 = vmatpush2.bf16.msra.mxu0 0
        %942 = vmatprep.subr.bf16.mxu0 0
        %943 = vmatpush2.bf16.msra.mxu0 0
        %944 = vmatprep.subr.bf16.mxu0 0
        %945 = vmatpush2.bf16.msra.mxu0 0
        %946 = vmatprep.subr.bf16.mxu0 0
        %947 = vmatpush2.bf16.msra.mxu0 0
        %948 = vmatprep.subr.bf16.mxu0 0
        %949 = vmatpush2.bf16.msra.mxu0 0
        %950 = vmatprep.subr.bf16.mxu0 0
        %951 = vmatpush2.bf16.msra.mxu0 0
        %952 = vmatprep.mubr.bf16.mxu0 0
        %953 = vmatmul.mubr.bf16.gmra.mxu0 %v718
        %v954 = vpop.f32.mrf.mxu0
        %v955 = vadd.f32 0.0, %v954
        %v956 = vpop.f32.mrf.mxu0
        %v957 = vadd.f32 0.0, %v956
        %v958 = vpop.f32.mrf.mxu0
        %v959 = vpop.f32.mrf.mxu0
        %960 = vdwg.mxu0
        %v961 = vunpack.c.l.bf16 %v716
        %v962 = vunpack.c.h.bf16 %v716
        %v963 = vunpack.c.l.bf16 %v717
        %v964 = vunpack.c.h.bf16 %v717
        %v965 = vadd.f32 %v961, %v914
        %v966 = vadd.f32 %v962, %v916
        %v967 = vadd.f32 %v963, %v955
        %v968 = vadd.f32 %v964, %v957
        %v969 = vxor.u32 %v965, 2147483648
        %v970 = vxor.u32 %v966, 2147483648
        %v971 = vxor.u32 %v967, 2147483648
        %v972 = vmul.f32 %v969, 1.442695
        %v973 = vpow.pop %v972
        %v974 = vmul.f32 %v970, 1.442695
        %v975 = vpow.pop %v974
        %v976 = vmul.f32 %v971, 1.442695
        %v977 = vpow.pop %v976
        %v978 = vadd.f32 %v973, 1.0
        %v979 = vadd.f32 %v975, 1.0
        %v980 = vadd.f32 %v977, 1.0
        %v981 = vrcp.pop %v978
        %v982 = vmul.f32 1.0, %v981
        %v983 = vrcp.pop %v979
        %v984 = vmul.f32 1.0, %v983
        %v985 = vrcp.pop %v980
        %v986 = vmul.f32 1.0, %v985
        %v987 = vtanh.pop %v968
        %v988 = vmul.f32 %v984, %v715
        %v989 = vmul.f32 %v982, %v987
        %v990 = vadd.f32 %v988, %v989
        %v991 = vtanh.pop %v990
        %v992 = vmul.f32 %v986, %v991
        %v993 = vpack.c.bf16 %v992, %v992
        %994 = vst [vmem:[#allocation5] sm:$0xf] %v993
        %s995 = scalar_lea.vmem [#allocation4], 16
        %v996 = vld [vmem:[%s995] sm:$0xff]
        %v997 = vld [vmem:[%s995 + $0x8] sm:$0xff]
        %998 = vmatprep.subr.bf16.mxu0 %v844
        %999 = vmatpush1.bf16.msra.mxu0 %v843
        %1000 = vmatprep.subr.bf16.mxu0 %v840
        %1001 = vmatpush1.bf16.msra.mxu0 %v839
        %1002 = vmatprep.subr.bf16.mxu0 %v836
        %1003 = vmatpush1.bf16.msra.mxu0 %v835
        %1004 = vmatprep.subr.bf16.mxu0 %v832
        %1005 = vmatpush1.bf16.msra.mxu0 %v831
        %1006 = vmatprep.subr.bf16.mxu0 %v828
        %1007 = vmatpush1.bf16.msra.mxu0 %v827
        %1008 = vmatprep.subr.bf16.mxu0 %v824
        %1009 = vmatpush1.bf16.msra.mxu0 %v823
        %1010 = vmatprep.subr.bf16.mxu0 %v820
        %1011 = vmatpush1.bf16.msra.mxu0 %v819
        %1012 = vmatprep.subr.bf16.mxu0 %v816
        %1013 = vmatpush1.bf16.msra.mxu0 %v815
        %1014 = vmatprep.subr.bf16.mxu0 0
        %1015 = vmatpush2.bf16.msra.mxu0 0
        %1016 = vmatprep.subr.bf16.mxu0 0
        %1017 = vmatpush2.bf16.msra.mxu0 0
        %1018 = vmatprep.subr.bf16.mxu0 0
        %1019 = vmatpush2.bf16.msra.mxu0 0
        %1020 = vmatprep.subr.bf16.mxu0 0
        %1021 = vmatpush2.bf16.msra.mxu0 0
        %1022 = vmatprep.subr.bf16.mxu0 0
        %1023 = vmatpush2.bf16.msra.mxu0 0
        %1024 = vmatprep.subr.bf16.mxu0 0
        %1025 = vmatpush2.bf16.msra.mxu0 0
        %1026 = vmatprep.subr.bf16.mxu0 0
        %1027 = vmatpush2.bf16.msra.mxu0 0
        %1028 = vmatprep.subr.bf16.mxu0 0
        %1029 = vmatpush2.bf16.msra.mxu0 0
        %1030 = vmatprep.mubr.bf16.mxu0 0
        %1031 = vmatmul.mubr.bf16.gmra.mxu0 %v993
        %v1032 = vpop.f32.mrf.mxu0
        %v1033 = vadd.f32 0.0, %v1032
        %v1034 = vpop.f32.mrf.mxu0
        %v1035 = vadd.f32 0.0, %v1034
        %v1036 = vpop.f32.mrf.mxu0
        %v1037 = vpop.f32.mrf.mxu0
        %1038 = vdwg.mxu0
        %1039 = vmatprep.subr.bf16.mxu0 %v846
        %1040 = vmatpush1.bf16.msra.mxu0 %v845
        %1041 = vmatprep.subr.bf16.mxu0 %v842
        %1042 = vmatpush1.bf16.msra.mxu0 %v841
        %1043 = vmatprep.subr.bf16.mxu0 %v838
        %1044 = vmatpush1.bf16.msra.mxu0 %v837
        %1045 = vmatprep.subr.bf16.mxu0 %v834
        %1046 = vmatpush1.bf16.msra.mxu0 %v833
        %1047 = vmatprep.subr.bf16.mxu0 %v830
        %1048 = vmatpush1.bf16.msra.mxu0 %v829
        %1049 = vmatprep.subr.bf16.mxu0 %v826
        %1050 = vmatpush1.bf16.msra.mxu0 %v825
        %1051 = vmatprep.subr.bf16.mxu0 %v822
        %1052 = vmatpush1.bf16.msra.mxu0 %v821
        %1053 = vmatprep.subr.bf16.mxu0 %v818
        %1054 = vmatpush1.bf16.msra.mxu0 %v817
        %1055 = vmatprep.subr.bf16.mxu0 0
        %1056 = vmatpush2.bf16.msra.mxu0 0
        %1057 = vmatprep.subr.bf16.mxu0 0
        %1058 = vmatpush2.bf16.msra.mxu0 0
        %1059 = vmatprep.subr.bf16.mxu0 0
        %1060 = vmatpush2.bf16.msra.mxu0 0
        %1061 = vmatprep.subr.bf16.mxu0 0
        %1062 = vmatpush2.bf16.msra.mxu0 0
        %1063 = vmatprep.subr.bf16.mxu0 0
        %1064 = vmatpush2.bf16.msra.mxu0 0
        %1065 = vmatprep.subr.bf16.mxu0 0
        %1066 = vmatpush2.bf16.msra.mxu0 0
        %1067 = vmatprep.subr.bf16.mxu0 0
        %1068 = vmatpush2.bf16.msra.mxu0 0
        %1069 = vmatprep.subr.bf16.mxu0 0
        %1070 = vmatpush2.bf16.msra.mxu0 0
        %1071 = vmatprep.mubr.bf16.mxu0 0
        %1072 = vmatmul.mubr.bf16.gmra.mxu0 %v993
        %v1073 = vpop.f32.mrf.mxu0
        %v1074 = vadd.f32 0.0, %v1073
        %v1075 = vpop.f32.mrf.mxu0
        %v1076 = vadd.f32 0.0, %v1075
        %v1077 = vpop.f32.mrf.mxu0
        %v1078 = vpop.f32.mrf.mxu0
        %1079 = vdwg.mxu0
        %v1080 = vunpack.c.l.bf16 %v996
        %v1081 = vunpack.c.h.bf16 %v996
        %v1082 = vunpack.c.l.bf16 %v997
        %v1083 = vunpack.c.h.bf16 %v997
        %v1084 = vadd.f32 %v1080, %v1033
        %v1085 = vadd.f32 %v1081, %v1035
        %v1086 = vadd.f32 %v1082, %v1074
        %v1087 = vadd.f32 %v1083, %v1076
        %v1088 = vxor.u32 %v1084, 2147483648
        %v1089 = vxor.u32 %v1085, 2147483648
        %v1090 = vxor.u32 %v1086, 2147483648
        %v1091 = vmul.f32 %v1088, 1.442695
        %v1092 = vpow.pop %v1091
        %v1093 = vmul.f32 %v1089, 1.442695
        %v1094 = vpow.pop %v1093
        %v1095 = vmul.f32 %v1090, 1.442695
        %v1096 = vpow.pop %v1095
        %v1097 = vadd.f32 %v1092, 1.0
        %v1098 = vadd.f32 %v1094, 1.0
        %v1099 = vadd.f32 %v1096, 1.0
        %v1100 = vrcp.pop %v1097
        %v1101 = vmul.f32 1.0, %v1100
        %v1102 = vrcp.pop %v1098
        %v1103 = vmul.f32 1.0, %v1102
        %v1104 = vrcp.pop %v1099
        %v1105 = vmul.f32 1.0, %v1104
        %v1106 = vtanh.pop %v1087
        %v1107 = vmul.f32 %v1103, %v990
        %v1108 = vmul.f32 %v1101, %v1106
        %v1109 = vadd.f32 %v1107, %v1108
        %v1110 = vtanh.pop %v1109
        %v1111 = vmul.f32 %v1105, %v1110
        %v1112 = vpack.c.bf16 %v1111, %v1111
        %s1113 = scalar_lea.vmem [#allocation5], 4
        %1114 = vst [vmem:[%s1113] sm:$0xf] %v1112
        %s1115 = scalar_lea.vmem [#allocation4], 32
        %v1116 = vld [vmem:[%s1115] sm:$0xff]
        %v1117 = vld [vmem:[%s1115 + $0x8] sm:$0xff]
        %1118 = vmatprep.subr.bf16.mxu0 %v844
        %1119 = vmatpush1.bf16.msra.mxu0 %v843
        %1120 = vmatprep.subr.bf16.mxu0 %v840
        %1121 = vmatpush1.bf16.msra.mxu0 %v839
        %1122 = vmatprep.subr.bf16.mxu0 %v836
        %1123 = vmatpush1.bf16.msra.mxu0 %v835
        %1124 = vmatprep.subr.bf16.mxu0 %v832
        %1125 = vmatpush1.bf16.msra.mxu0 %v831
        %1126 = vmatprep.subr.bf16.mxu0 %v828
        %1127 = vmatpush1.bf16.msra.mxu0 %v827
        %1128 = vmatprep.subr.bf16.mxu0 %v824
        %1129 = vmatpush1.bf16.msra.mxu0 %v823
        %1130 = vmatprep.subr.bf16.mxu0 %v820
        %1131 = vmatpush1.bf16.msra.mxu0 %v819
        %1132 = vmatprep.subr.bf16.mxu0 %v816
        %1133 = vmatpush1.bf16.msra.mxu0 %v815
        %1134 = vmatprep.subr.bf16.mxu0 0
        %1135 = vmatpush2.bf16.msra.mxu0 0
        %1136 = vmatprep.subr.bf16.mxu0 0
        %1137 = vmatpush2.bf16.msra.mxu0 0
        %1138 = vmatprep.subr.bf16.mxu0 0
        %1139 = vmatpush2.bf16.msra.mxu0 0
        %1140 = vmatprep.subr.bf16.mxu0 0
        %1141 = vmatpush2.bf16.msra.mxu0 0
        %1142 = vmatprep.subr.bf16.mxu0 0
        %1143 = vmatpush2.bf16.msra.mxu0 0
        %1144 = vmatprep.subr.bf16.mxu0 0
        %1145 = vmatpush2.bf16.msra.mxu0 0
        %1146 = vmatprep.subr.bf16.mxu0 0
        %1147 = vmatpush2.bf16.msra.mxu0 0
        %1148 = vmatprep.subr.bf16.mxu0 0
        %1149 = vmatpush2.bf16.msra.mxu0 0
        %1150 = vmatprep.mubr.bf16.mxu0 0
        %1151 = vmatmul.mubr.bf16.gmra.mxu0 %v1112
        %v1152 = vpop.f32.mrf.mxu0
        %v1153 = vadd.f32 0.0, %v1152
        %v1154 = vpop.f32.mrf.mxu0
        %v1155 = vadd.f32 0.0, %v1154
        %v1156 = vpop.f32.mrf.mxu0
        %v1157 = vpop.f32.mrf.mxu0
        %1158 = vdwg.mxu0
        %1159 = vmatprep.subr.bf16.mxu0 %v846
        %1160 = vmatpush1.bf16.msra.mxu0 %v845
        %1161 = vmatprep.subr.bf16.mxu0 %v842
        %1162 = vmatpush1.bf16.msra.mxu0 %v841
        %1163 = vmatprep.subr.bf16.mxu0 %v838
        %1164 = vmatpush1.bf16.msra.mxu0 %v837
        %1165 = vmatprep.subr.bf16.mxu0 %v834
        %1166 = vmatpush1.bf16.msra.mxu0 %v833
        %1167 = vmatprep.subr.bf16.mxu0 %v830
        %1168 = vmatpush1.bf16.msra.mxu0 %v829
        %1169 = vmatprep.subr.bf16.mxu0 %v826
        %1170 = vmatpush1.bf16.msra.mxu0 %v825
        %1171 = vmatprep.subr.bf16.mxu0 %v822
        %1172 = vmatpush1.bf16.msra.mxu0 %v821
        %1173 = vmatprep.subr.bf16.mxu0 %v818
        %1174 = vmatpush1.bf16.msra.mxu0 %v817
        %1175 = vmatprep.subr.bf16.mxu0 0
        %1176 = vmatpush2.bf16.msra.mxu0 0
        %1177 = vmatprep.subr.bf16.mxu0 0
        %1178 = vmatpush2.bf16.msra.mxu0 0
        %1179 = vmatprep.subr.bf16.mxu0 0
        %1180 = vmatpush2.bf16.msra.mxu0 0
        %1181 = vmatprep.subr.bf16.mxu0 0
        %1182 = vmatpush2.bf16.msra.mxu0 0
        %1183 = vmatprep.subr.bf16.mxu0 0
        %1184 = vmatpush2.bf16.msra.mxu0 0
        %1185 = vmatprep.subr.bf16.mxu0 0
        %1186 = vmatpush2.bf16.msra.mxu0 0
        %1187 = vmatprep.subr.bf16.mxu0 0
        %1188 = vmatpush2.bf16.msra.mxu0 0
        %1189 = vmatprep.subr.bf16.mxu0 0
        %1190 = vmatpush2.bf16.msra.mxu0 0
        %1191 = vmatprep.mubr.bf16.mxu0 0
        %1192 = vmatmul.mubr.bf16.gmra.mxu0 %v1112
        %v1193 = vpop.f32.mrf.mxu0
        %v1194 = vadd.f32 0.0, %v1193
        %v1195 = vpop.f32.mrf.mxu0
        %v1196 = vadd.f32 0.0, %v1195
        %v1197 = vpop.f32.mrf.mxu0
        %v1198 = vpop.f32.mrf.mxu0
        %1199 = vdwg.mxu0
        %v1200 = vunpack.c.l.bf16 %v1116
        %v1201 = vunpack.c.h.bf16 %v1116
        %v1202 = vunpack.c.l.bf16 %v1117
        %v1203 = vunpack.c.h.bf16 %v1117
        %v1204 = vadd.f32 %v1200, %v1153
        %v1205 = vadd.f32 %v1201, %v1155
        %v1206 = vadd.f32 %v1202, %v1194
        %v1207 = vadd.f32 %v1203, %v1196
        %v1208 = vxor.u32 %v1204, 2147483648
        %v1209 = vxor.u32 %v1205, 2147483648
        %v1210 = vxor.u32 %v1206, 2147483648
        %v1211 = vmul.f32 %v1208, 1.442695
        %v1212 = vpow.pop %v1211
        %v1213 = vmul.f32 %v1209, 1.442695
        %v1214 = vpow.pop %v1213
        %v1215 = vmul.f32 %v1210, 1.442695
        %v1216 = vpow.pop %v1215
        %v1217 = vadd.f32 %v1212, 1.0
        %v1218 = vadd.f32 %v1214, 1.0
        %v1219 = vadd.f32 %v1216, 1.0
        %v1220 = vrcp.pop %v1217
        %v1221 = vmul.f32 1.0, %v1220
        %v1222 = vrcp.pop %v1218
        %v1223 = vmul.f32 1.0, %v1222
        %v1224 = vrcp.pop %v1219
        %v1225 = vmul.f32 1.0, %v1224
        %v1226 = vtanh.pop %v1207
        %v1227 = vmul.f32 %v1223, %v1109
        %v1228 = vmul.f32 %v1221, %v1226
        %v1229 = vadd.f32 %v1227, %v1228
        %v1230 = vtanh.pop %v1229
        %v1231 = vmul.f32 %v1225, %v1230
        %v1232 = vpack.c.bf16 %v1231, %v1231
        %s1233 = scalar_lea.vmem [#allocation5], 8
        %1234 = vst [vmem:[%s1233] sm:$0xf] %v1232
        %s1235 = scalar_lea.vmem [#allocation4], 48
        %v1236 = vld [vmem:[%s1235] sm:$0xff]
        %v1237 = vld [vmem:[%s1235 + $0x8] sm:$0xff]
        %1238 = vmatprep.subr.bf16.mxu0 %v844
        %1239 = vmatpush1.bf16.msra.mxu0 %v843
        %1240 = vmatprep.subr.bf16.mxu0 %v840
        %1241 = vmatpush1.bf16.msra.mxu0 %v839
        %1242 = vmatprep.subr.bf16.mxu0 %v836
        %1243 = vmatpush1.bf16.msra.mxu0 %v835
        %1244 = vmatprep.subr.bf16.mxu0 %v832
        %1245 = vmatpush1.bf16.msra.mxu0 %v831
        %1246 = vmatprep.subr.bf16.mxu0 %v828
        %1247 = vmatpush1.bf16.msra.mxu0 %v827
        %1248 = vmatprep.subr.bf16.mxu0 %v824
        %1249 = vmatpush1.bf16.msra.mxu0 %v823
        %1250 = vmatprep.subr.bf16.mxu0 %v820
        %1251 = vmatpush1.bf16.msra.mxu0 %v819
        %1252 = vmatprep.subr.bf16.mxu0 %v816
        %1253 = vmatpush1.bf16.msra.mxu0 %v815
        %1254 = vmatprep.subr.bf16.mxu0 0
        %1255 = vmatpush2.bf16.msra.mxu0 0
        %1256 = vmatprep.subr.bf16.mxu0 0
        %1257 = vmatpush2.bf16.msra.mxu0 0
        %1258 = vmatprep.subr.bf16.mxu0 0
        %1259 = vmatpush2.bf16.msra.mxu0 0
        %1260 = vmatprep.subr.bf16.mxu0 0
        %1261 = vmatpush2.bf16.msra.mxu0 0
        %1262 = vmatprep.subr.bf16.mxu0 0
        %1263 = vmatpush2.bf16.msra.mxu0 0
        %1264 = vmatprep.subr.bf16.mxu0 0
        %1265 = vmatpush2.bf16.msra.mxu0 0
        %1266 = vmatprep.subr.bf16.mxu0 0
        %1267 = vmatpush2.bf16.msra.mxu0 0
        %1268 = vmatprep.subr.bf16.mxu0 0
        %1269 = vmatpush2.bf16.msra.mxu0 0
        %1270 = vmatprep.mubr.bf16.mxu0 0
        %1271 = vmatmul.mubr.bf16.gmra.mxu0 %v1232
        %v1272 = vpop.f32.mrf.mxu0
        %v1273 = vadd.f32 0.0, %v1272
        %v1274 = vpop.f32.mrf.mxu0
        %v1275 = vadd.f32 0.0, %v1274
        %v1276 = vpop.f32.mrf.mxu0
        %v1277 = vpop.f32.mrf.mxu0
        %1278 = vdwg.mxu0
        %1279 = vmatprep.subr.bf16.mxu0 %v846
        %1280 = vmatpush1.bf16.msra.mxu0 %v845
        %1281 = vmatprep.subr.bf16.mxu0 %v842
        %1282 = vmatpush1.bf16.msra.mxu0 %v841
        %1283 = vmatprep.subr.bf16.mxu0 %v838
        %1284 = vmatpush1.bf16.msra.mxu0 %v837
        %1285 = vmatprep.subr.bf16.mxu0 %v834
        %1286 = vmatpush1.bf16.msra.mxu0 %v833
        %1287 = vmatprep.subr.bf16.mxu0 %v830
        %1288 = vmatpush1.bf16.msra.mxu0 %v829
        %1289 = vmatprep.subr.bf16.mxu0 %v826
        %1290 = vmatpush1.bf16.msra.mxu0 %v825
        %1291 = vmatprep.subr.bf16.mxu0 %v822
        %1292 = vmatpush1.bf16.msra.mxu0 %v821
        %1293 = vmatprep.subr.bf16.mxu0 %v818
        %1294 = vmatpush1.bf16.msra.mxu0 %v817
        %1295 = vmatprep.subr.bf16.mxu0 0
        %1296 = vmatpush2.bf16.msra.mxu0 0
        %1297 = vmatprep.subr.bf16.mxu0 0
        %1298 = vmatpush2.bf16.msra.mxu0 0
        %1299 = vmatprep.subr.bf16.mxu0 0
        %1300 = vmatpush2.bf16.msra.mxu0 0
        %1301 = vmatprep.subr.bf16.mxu0 0
        %1302 = vmatpush2.bf16.msra.mxu0 0
        %1303 = vmatprep.subr.bf16.mxu0 0
        %1304 = vmatpush2.bf16.msra.mxu0 0
        %1305 = vmatprep.subr.bf16.mxu0 0
        %1306 = vmatpush2.bf16.msra.mxu0 0
        %1307 = vmatprep.subr.bf16.mxu0 0
        %1308 = vmatpush2.bf16.msra.mxu0 0
        %1309 = vmatprep.subr.bf16.mxu0 0
        %1310 = vmatpush2.bf16.msra.mxu0 0
        %1311 = vmatprep.mubr.bf16.mxu0 0
        %1312 = vmatmul.mubr.bf16.gmra.mxu0 %v1232
        %v1313 = vpop.f32.mrf.mxu0
        %v1314 = vadd.f32 0.0, %v1313
        %v1315 = vpop.f32.mrf.mxu0
        %v1316 = vadd.f32 0.0, %v1315
        %v1317 = vpop.f32.mrf.mxu0
        %v1318 = vpop.f32.mrf.mxu0
        %1319 = vdwg.mxu0
        %v1320 = vunpack.c.l.bf16 %v1236
        %v1321 = vunpack.c.h.bf16 %v1236
        %v1322 = vunpack.c.l.bf16 %v1237
        %v1323 = vunpack.c.h.bf16 %v1237
        %v1324 = vadd.f32 %v1320, %v1273
        %v1325 = vadd.f32 %v1321, %v1275
        %v1326 = vadd.f32 %v1322, %v1314
        %v1327 = vadd.f32 %v1323, %v1316
        %v1328 = vxor.u32 %v1324, 2147483648
        %v1329 = vxor.u32 %v1325, 2147483648
        %v1330 = vxor.u32 %v1326, 2147483648
        %v1331 = vmul.f32 %v1328, 1.442695
        %v1332 = vpow.pop %v1331
        %v1333 = vmul.f32 %v1329, 1.442695
        %v1334 = vpow.pop %v1333
        %v1335 = vmul.f32 %v1330, 1.442695
        %v1336 = vpow.pop %v1335
        %v1337 = vadd.f32 %v1332, 1.0
        %v1338 = vadd.f32 %v1334, 1.0
        %v1339 = vadd.f32 %v1336, 1.0
        %v1340 = vrcp.pop %v1337
        %v1341 = vmul.f32 1.0, %v1340
        %v1342 = vrcp.pop %v1338
        %v1343 = vmul.f32 1.0, %v1342
        %v1344 = vrcp.pop %v1339
        %v1345 = vmul.f32 1.0, %v1344
        %v1346 = vtanh.pop %v1327
        %v1347 = vmul.f32 %v1343, %v1229
        %v1348 = vmul.f32 %v1341, %v1346
        %v1349 = vadd.f32 %v1347, %v1348
        %v1350 = vtanh.pop %v1349
        %v1351 = vmul.f32 %v1345, %v1350
        %v1352 = vpack.c.bf16 %v1351, %v1351
        %s1353 = scalar_lea.vmem [#allocation5], 12
        %1354 = vst [vmem:[%s1353] sm:$0xf] %v1352
        %s1355 = scalar_lea.vmem [#allocation4], 64
        %v1356 = vld [vmem:[%s1355] sm:$0xff]
        %v1357 = vld [vmem:[%s1355 + $0x8] sm:$0xff]
        %1358 = vmatprep.subr.bf16.mxu0 %v844
        %1359 = vmatpush1.bf16.msra.mxu0 %v843
        %1360 = vmatprep.subr.bf16.mxu0 %v840
        %1361 = vmatpush1.bf16.msra.mxu0 %v839
        %1362 = vmatprep.subr.bf16.mxu0 %v836
        %1363 = vmatpush1.bf16.msra.mxu0 %v835
        %1364 = vmatprep.subr.bf16.mxu0 %v832
        %1365 = vmatpush1.bf16.msra.mxu0 %v831
        %1366 = vmatprep.subr.bf16.mxu0 %v828
        %1367 = vmatpush1.bf16.msra.mxu0 %v827
        %1368 = vmatprep.subr.bf16.mxu0 %v824
        %1369 = vmatpush1.bf16.msra.mxu0 %v823
        %1370 = vmatprep.subr.bf16.mxu0 %v820
        %1371 = vmatpush1.bf16.msra.mxu0 %v819
        %1372 = vmatprep.subr.bf16.mxu0 %v816
        %1373 = vmatpush1.bf16.msra.mxu0 %v815
        %1374 = vmatprep.subr.bf16.mxu0 0
        %1375 = vmatpush2.bf16.msra.mxu0 0
        %1376 = vmatprep.subr.bf16.mxu0 0
        %1377 = vmatpush2.bf16.msra.mxu0 0
        %1378 = vmatprep.subr.bf16.mxu0 0
        %1379 = vmatpush2.bf16.msra.mxu0 0
        %1380 = vmatprep.subr.bf16.mxu0 0
        %1381 = vmatpush2.bf16.msra.mxu0 0
        %1382 = vmatprep.subr.bf16.mxu0 0
        %1383 = vmatpush2.bf16.msra.mxu0 0
        %1384 = vmatprep.subr.bf16.mxu0 0
        %1385 = vmatpush2.bf16.msra.mxu0 0
        %1386 = vmatprep.subr.bf16.mxu0 0
        %1387 = vmatpush2.bf16.msra.mxu0 0
        %1388 = vmatprep.subr.bf16.mxu0 0
        %1389 = vmatpush2.bf16.msra.mxu0 0
        %1390 = vmatprep.mubr.bf16.mxu0 0
        %1391 = vmatmul.mubr.bf16.gmra.mxu0 %v1352
        %v1392 = vpop.f32.mrf.mxu0
        %v1393 = vadd.f32 0.0, %v1392
        %v1394 = vpop.f32.mrf.mxu0
        %v1395 = vadd.f32 0.0, %v1394
        %v1396 = vpop.f32.mrf.mxu0
        %v1397 = vpop.f32.mrf.mxu0
        %1398 = vdwg.mxu0
        %1399 = vmatprep.subr.bf16.mxu0 %v846
        %1400 = vmatpush1.bf16.msra.mxu0 %v845
        %1401 = vmatprep.subr.bf16.mxu0 %v842
        %1402 = vmatpush1.bf16.msra.mxu0 %v841
        %1403 = vmatprep.subr.bf16.mxu0 %v838
        %1404 = vmatpush1.bf16.msra.mxu0 %v837
        %1405 = vmatprep.subr.bf16.mxu0 %v834
        %1406 = vmatpush1.bf16.msra.mxu0 %v833
        %1407 = vmatprep.subr.bf16.mxu0 %v830
        %1408 = vmatpush1.bf16.msra.mxu0 %v829
        %1409 = vmatprep.subr.bf16.mxu0 %v826
        %1410 = vmatpush1.bf16.msra.mxu0 %v825
        %1411 = vmatprep.subr.bf16.mxu0 %v822
        %1412 = vmatpush1.bf16.msra.mxu0 %v821
        %1413 = vmatprep.subr.bf16.mxu0 %v818
        %1414 = vmatpush1.bf16.msra.mxu0 %v817
        %1415 = vmatprep.subr.bf16.mxu0 0
        %1416 = vmatpush2.bf16.msra.mxu0 0
        %1417 = vmatprep.subr.bf16.mxu0 0
        %1418 = vmatpush2.bf16.msra.mxu0 0
        %1419 = vmatprep.subr.bf16.mxu0 0
        %1420 = vmatpush2.bf16.msra.mxu0 0
        %1421 = vmatprep.subr.bf16.mxu0 0
        %1422 = vmatpush2.bf16.msra.mxu0 0
        %1423 = vmatprep.subr.bf16.mxu0 0
        %1424 = vmatpush2.bf16.msra.mxu0 0
        %1425 = vmatprep.subr.bf16.mxu0 0
        %1426 = vmatpush2.bf16.msra.mxu0 0
        %1427 = vmatprep.subr.bf16.mxu0 0
        %1428 = vmatpush2.bf16.msra.mxu0 0
        %1429 = vmatprep.subr.bf16.mxu0 0
        %1430 = vmatpush2.bf16.msra.mxu0 0
        %1431 = vmatprep.mubr.bf16.mxu0 0
        %1432 = vmatmul.mubr.bf16.gmra.mxu0 %v1352
        %v1433 = vpop.f32.mrf.mxu0
        %v1434 = vadd.f32 0.0, %v1433
        %v1435 = vpop.f32.mrf.mxu0
        %v1436 = vadd.f32 0.0, %v1435
        %v1437 = vpop.f32.mrf.mxu0
        %v1438 = vpop.f32.mrf.mxu0
        %1439 = vdwg.mxu0
        %v1440 = vunpack.c.l.bf16 %v1356
        %v1441 = vunpack.c.h.bf16 %v1356
        %v1442 = vunpack.c.l.bf16 %v1357
        %v1443 = vunpack.c.h.bf16 %v1357
        %v1444 = vadd.f32 %v1440, %v1393
        %v1445 = vadd.f32 %v1441, %v1395
        %v1446 = vadd.f32 %v1442, %v1434
        %v1447 = vadd.f32 %v1443, %v1436
        %v1448 = vxor.u32 %v1444, 2147483648
        %v1449 = vxor.u32 %v1445, 2147483648
        %v1450 = vxor.u32 %v1446, 2147483648
        %v1451 = vmul.f32 %v1448, 1.442695
        %v1452 = vpow.pop %v1451
        %v1453 = vmul.f32 %v1449, 1.442695
        %v1454 = vpow.pop %v1453
        %v1455 = vmul.f32 %v1450, 1.442695
        %v1456 = vpow.pop %v1455
        %v1457 = vadd.f32 %v1452, 1.0
        %v1458 = vadd.f32 %v1454, 1.0
        %v1459 = vadd.f32 %v1456, 1.0
        %v1460 = vrcp.pop %v1457
        %v1461 = vmul.f32 1.0, %v1460
        %v1462 = vrcp.pop %v1458
        %v1463 = vmul.f32 1.0, %v1462
        %v1464 = vrcp.pop %v1459
        %v1465 = vmul.f32 1.0, %v1464
        %v1466 = vtanh.pop %v1447
        %v1467 = vmul.f32 %v1463, %v1349
        %v1468 = vmul.f32 %v1461, %v1466
        %v1469 = vadd.f32 %v1467, %v1468
        %v1470 = vtanh.pop %v1469
        %v1471 = vmul.f32 %v1465, %v1470
        %v1472 = vpack.c.bf16 %v1471, %v1471
        %s1473 = scalar_lea.vmem [#allocation5], 16
        %1474 = vst [vmem:[%s1473] sm:$0xf] %v1472
        %s1475 = scalar_lea.vmem [#allocation4], 80
        %v1476 = vld [vmem:[%s1475] sm:$0xff]
        %v1477 = vld [vmem:[%s1475 + $0x8] sm:$0xff]
        %1478 = vmatprep.subr.bf16.mxu0 %v844
        %1479 = vmatpush1.bf16.msra.mxu0 %v843
        %1480 = vmatprep.subr.bf16.mxu0 %v840
        %1481 = vmatpush1.bf16.msra.mxu0 %v839
        %1482 = vmatprep.subr.bf16.mxu0 %v836
        %1483 = vmatpush1.bf16.msra.mxu0 %v835
        %1484 = vmatprep.subr.bf16.mxu0 %v832
        %1485 = vmatpush1.bf16.msra.mxu0 %v831
        %1486 = vmatprep.subr.bf16.mxu0 %v828
        %1487 = vmatpush1.bf16.msra.mxu0 %v827
        %1488 = vmatprep.subr.bf16.mxu0 %v824
        %1489 = vmatpush1.bf16.msra.mxu0 %v823
        %1490 = vmatprep.subr.bf16.mxu0 %v820
        %1491 = vmatpush1.bf16.msra.mxu0 %v819
        %1492 = vmatprep.subr.bf16.mxu0 %v816
        %1493 = vmatpush1.bf16.msra.mxu0 %v815
        %1494 = vmatprep.subr.bf16.mxu0 0
        %1495 = vmatpush2.bf16.msra.mxu0 0
        %1496 = vmatprep.subr.bf16.mxu0 0
        %1497 = vmatpush2.bf16.msra.mxu0 0
        %1498 = vmatprep.subr.bf16.mxu0 0
        %1499 = vmatpush2.bf16.msra.mxu0 0
        %1500 = vmatprep.subr.bf16.mxu0 0
        %1501 = vmatpush2.bf16.msra.mxu0 0
        %1502 = vmatprep.subr.bf16.mxu0 0
        %1503 = vmatpush2.bf16.msra.mxu0 0
        %1504 = vmatprep.subr.bf16.mxu0 0
        %1505 = vmatpush2.bf16.msra.mxu0 0
        %1506 = vmatprep.subr.bf16.mxu0 0
        %1507 = vmatpush2.bf16.msra.mxu0 0
        %1508 = vmatprep.subr.bf16.mxu0 0
        %1509 = vmatpush2.bf16.msra.mxu0 0
        %1510 = vmatprep.mubr.bf16.mxu0 0
        %1511 = vmatmul.mubr.bf16.gmra.mxu0 %v1472
        %v1512 = vpop.f32.mrf.mxu0
        %v1513 = vadd.f32 0.0, %v1512
        %v1514 = vpop.f32.mrf.mxu0
        %v1515 = vadd.f32 0.0, %v1514
        %v1516 = vpop.f32.mrf.mxu0
        %v1517 = vpop.f32.mrf.mxu0
        %1518 = vdwg.mxu0
        %1519 = vmatprep.subr.bf16.mxu0 %v846
        %1520 = vmatpush1.bf16.msra.mxu0 %v845
        %1521 = vmatprep.subr.bf16.mxu0 %v842
        %1522 = vmatpush1.bf16.msra.mxu0 %v841
        %1523 = vmatprep.subr.bf16.mxu0 %v838
        %1524 = vmatpush1.bf16.msra.mxu0 %v837
        %1525 = vmatprep.subr.bf16.mxu0 %v834
        %1526 = vmatpush1.bf16.msra.mxu0 %v833
        %1527 = vmatprep.subr.bf16.mxu0 %v830
        %1528 = vmatpush1.bf16.msra.mxu0 %v829
        %1529 = vmatprep.subr.bf16.mxu0 %v826
        %1530 = vmatpush1.bf16.msra.mxu0 %v825
        %1531 = vmatprep.subr.bf16.mxu0 %v822
        %1532 = vmatpush1.bf16.msra.mxu0 %v821
        %1533 = vmatprep.subr.bf16.mxu0 %v818
        %1534 = vmatpush1.bf16.msra.mxu0 %v817
        %1535 = vmatprep.subr.bf16.mxu0 0
        %1536 = vmatpush2.bf16.msra.mxu0 0
        %1537 = vmatprep.subr.bf16.mxu0 0
        %1538 = vmatpush2.bf16.msra.mxu0 0
        %1539 = vmatprep.subr.bf16.mxu0 0
        %1540 = vmatpush2.bf16.msra.mxu0 0
        %1541 = vmatprep.subr.bf16.mxu0 0
        %1542 = vmatpush2.bf16.msra.mxu0 0
        %1543 = vmatprep.subr.bf16.mxu0 0
        %1544 = vmatpush2.bf16.msra.mxu0 0
        %1545 = vmatprep.subr.bf16.mxu0 0
        %1546 = vmatpush2.bf16.msra.mxu0 0
        %1547 = vmatprep.subr.bf16.mxu0 0
        %1548 = vmatpush2.bf16.msra.mxu0 0
        %1549 = vmatprep.subr.bf16.mxu0 0
        %1550 = vmatpush2.bf16.msra.mxu0 0
        %1551 = vmatprep.mubr.bf16.mxu0 0
        %1552 = vmatmul.mubr.bf16.gmra.mxu0 %v1472
        %v1553 = vpop.f32.mrf.mxu0
        %v1554 = vadd.f32 0.0, %v1553
        %v1555 = vpop.f32.mrf.mxu0
        %v1556 = vadd.f32 0.0, %v1555
        %v1557 = vpop.f32.mrf.mxu0
        %v1558 = vpop.f32.mrf.mxu0
        %1559 = vdwg.mxu0
        %v1560 = vunpack.c.l.bf16 %v1476
        %v1561 = vunpack.c.h.bf16 %v1476
        %v1562 = vunpack.c.l.bf16 %v1477
        %v1563 = vunpack.c.h.bf16 %v1477
        %v1564 = vadd.f32 %v1560, %v1513
        %v1565 = vadd.f32 %v1561, %v1515
        %v1566 = vadd.f32 %v1562, %v1554
        %v1567 = vadd.f32 %v1563, %v1556
        %v1568 = vxor.u32 %v1564, 2147483648
        %v1569 = vxor.u32 %v1565, 2147483648
        %v1570 = vxor.u32 %v1566, 2147483648
        %v1571 = vmul.f32 %v1568, 1.442695
        %v1572 = vpow.pop %v1571
        %v1573 = vmul.f32 %v1569, 1.442695
        %v1574 = vpow.pop %v1573
        %v1575 = vmul.f32 %v1570, 1.442695
        %v1576 = vpow.pop %v1575
        %v1577 = vadd.f32 %v1572, 1.0
        %v1578 = vadd.f32 %v1574, 1.0
        %v1579 = vadd.f32 %v1576, 1.0
        %v1580 = vrcp.pop %v1577
        %v1581 = vmul.f32 1.0, %v1580
        %v1582 = vrcp.pop %v1578
        %v1583 = vmul.f32 1.0, %v1582
        %v1584 = vrcp.pop %v1579
        %v1585 = vmul.f32 1.0, %v1584
        %v1586 = vtanh.pop %v1567
        %v1587 = vmul.f32 %v1583, %v1469
        %v1588 = vmul.f32 %v1581, %v1586
        %v1589 = vadd.f32 %v1587, %v1588
        %v1590 = vtanh.pop %v1589
        %v1591 = vmul.f32 %v1585, %v1590
        %v1592 = vpack.c.bf16 %v1591, %v1591
        %s1593 = scalar_lea.vmem [#allocation5], 20
        %1594 = vst [vmem:[%s1593] sm:$0xf] %v1592
        %s1595 = scalar_lea.vmem [#allocation4], 96
        %v1596 = vld [vmem:[%s1595] sm:$0xff]
        %v1597 = vld [vmem:[%s1595 + $0x8] sm:$0xff]
        %1598 = vmatprep.subr.bf16.mxu0 %v844
        %1599 = vmatpush1.bf16.msra.mxu0 %v843
        %1600 = vmatprep.subr.bf16.mxu0 %v840
        %1601 = vmatpush1.bf16.msra.mxu0 %v839
        %1602 = vmatprep.subr.bf16.mxu0 %v836
        %1603 = vmatpush1.bf16.msra.mxu0 %v835
        %1604 = vmatprep.subr.bf16.mxu0 %v832
        %1605 = vmatpush1.bf16.msra.mxu0 %v831
        %1606 = vmatprep.subr.bf16.mxu0 %v828
        %1607 = vmatpush1.bf16.msra.mxu0 %v827
        %1608 = vmatprep.subr.bf16.mxu0 %v824
        %1609 = vmatpush1.bf16.msra.mxu0 %v823
        %1610 = vmatprep.subr.bf16.mxu0 %v820
        %1611 = vmatpush1.bf16.msra.mxu0 %v819
        %1612 = vmatprep.subr.bf16.mxu0 %v816
        %1613 = vmatpush1.bf16.msra.mxu0 %v815
        %1614 = vmatprep.subr.bf16.mxu0 0
        %1615 = vmatpush2.bf16.msra.mxu0 0
        %1616 = vmatprep.subr.bf16.mxu0 0
        %1617 = vmatpush2.bf16.msra.mxu0 0
        %1618 = vmatprep.subr.bf16.mxu0 0
        %1619 = vmatpush2.bf16.msra.mxu0 0
        %1620 = vmatprep.subr.bf16.mxu0 0
        %1621 = vmatpush2.bf16.msra.mxu0 0
        %1622 = vmatprep.subr.bf16.mxu0 0
        %1623 = vmatpush2.bf16.msra.mxu0 0
        %1624 = vmatprep.subr.bf16.mxu0 0
        %1625 = vmatpush2.bf16.msra.mxu0 0
        %1626 = vmatprep.subr.bf16.mxu0 0
        %1627 = vmatpush2.bf16.msra.mxu0 0
        %1628 = vmatprep.subr.bf16.mxu0 0
        %1629 = vmatpush2.bf16.msra.mxu0 0
        %1630 = vmatprep.mubr.bf16.mxu0 0
        %1631 = vmatmul.mubr.bf16.gmra.mxu0 %v1592
        %v1632 = vpop.f32.mrf.mxu0
        %v1633 = vadd.f32 0.0, %v1632
        %v1634 = vpop.f32.mrf.mxu0
        %v1635 = vadd.f32 0.0, %v1634
        %v1636 = vpop.f32.mrf.mxu0
        %v1637 = vpop.f32.mrf.mxu0
        %1638 = vdwg.mxu0
        %1639 = vmatprep.subr.bf16.mxu0 %v846
        %1640 = vmatpush1.bf16.msra.mxu0 %v845
        %1641 = vmatprep.subr.bf16.mxu0 %v842
        %1642 = vmatpush1.bf16.msra.mxu0 %v841
        %1643 = vmatprep.subr.bf16.mxu0 %v838
        %1644 = vmatpush1.bf16.msra.mxu0 %v837
        %1645 = vmatprep.subr.bf16.mxu0 %v834
        %1646 = vmatpush1.bf16.msra.mxu0 %v833
        %1647 = vmatprep.subr.bf16.mxu0 %v830
        %1648 = vmatpush1.bf16.msra.mxu0 %v829
        %1649 = vmatprep.subr.bf16.mxu0 %v826
        %1650 = vmatpush1.bf16.msra.mxu0 %v825
        %1651 = vmatprep.subr.bf16.mxu0 %v822
        %1652 = vmatpush1.bf16.msra.mxu0 %v821
        %1653 = vmatprep.subr.bf16.mxu0 %v818
        %1654 = vmatpush1.bf16.msra.mxu0 %v817
        %1655 = vmatprep.subr.bf16.mxu0 0
        %1656 = vmatpush2.bf16.msra.mxu0 0
        %1657 = vmatprep.subr.bf16.mxu0 0
        %1658 = vmatpush2.bf16.msra.mxu0 0
        %1659 = vmatprep.subr.bf16.mxu0 0
        %1660 = vmatpush2.bf16.msra.mxu0 0
        %1661 = vmatprep.subr.bf16.mxu0 0
        %1662 = vmatpush2.bf16.msra.mxu0 0
        %1663 = vmatprep.subr.bf16.mxu0 0
        %1664 = vmatpush2.bf16.msra.mxu0 0
        %1665 = vmatprep.subr.bf16.mxu0 0
        %1666 = vmatpush2.bf16.msra.mxu0 0
        %1667 = vmatprep.subr.bf16.mxu0 0
        %1668 = vmatpush2.bf16.msra.mxu0 0
        %1669 = vmatprep.subr.bf16.mxu0 0
        %1670 = vmatpush2.bf16.msra.mxu0 0
        %1671 = vmatprep.mubr.bf16.mxu0 0
        %1672 = vmatmul.mubr.bf16.gmra.mxu0 %v1592
        %v1673 = vpop.f32.mrf.mxu0
        %v1674 = vadd.f32 0.0, %v1673
        %v1675 = vpop.f32.mrf.mxu0
        %v1676 = vadd.f32 0.0, %v1675
        %v1677 = vpop.f32.mrf.mxu0
        %v1678 = vpop.f32.mrf.mxu0
        %1679 = vdwg.mxu0
        %v1680 = vunpack.c.l.bf16 %v1596
        %v1681 = vunpack.c.h.bf16 %v1596
        %v1682 = vunpack.c.l.bf16 %v1597
        %v1683 = vunpack.c.h.bf16 %v1597
        %v1684 = vadd.f32 %v1680, %v1633
        %v1685 = vadd.f32 %v1681, %v1635
        %v1686 = vadd.f32 %v1682, %v1674
        %v1687 = vadd.f32 %v1683, %v1676
        %v1688 = vxor.u32 %v1684, 2147483648
        %v1689 = vxor.u32 %v1685, 2147483648
        %v1690 = vxor.u32 %v1686, 2147483648
        %v1691 = vmul.f32 %v1688, 1.442695
        %v1692 = vpow.pop %v1691
        %v1693 = vmul.f32 %v1689, 1.442695
        %v1694 = vpow.pop %v1693
        %v1695 = vmul.f32 %v1690, 1.442695
        %v1696 = vpow.pop %v1695
        %v1697 = vadd.f32 %v1692, 1.0
        %v1698 = vadd.f32 %v1694, 1.0
        %v1699 = vadd.f32 %v1696, 1.0
        %v1700 = vrcp.pop %v1697
        %v1701 = vmul.f32 1.0, %v1700
        %v1702 = vrcp.pop %v1698
        %v1703 = vmul.f32 1.0, %v1702
        %v1704 = vrcp.pop %v1699
        %v1705 = vmul.f32 1.0, %v1704
        %v1706 = vtanh.pop %v1687
        %v1707 = vmul.f32 %v1703, %v1589
        %v1708 = vmul.f32 %v1701, %v1706
        %v1709 = vadd.f32 %v1707, %v1708
        %v1710 = vtanh.pop %v1709
        %v1711 = vmul.f32 %v1705, %v1710
        %v1712 = vpack.c.bf16 %v1711, %v1711
        %s1713 = scalar_lea.vmem [#allocation5], 24
        %1714 = vst [vmem:[%s1713] sm:$0xf] %v1712
        %s1715 = scalar_lea.vmem [#allocation4], 112
        %v1716 = vld [vmem:[%s1715] sm:$0xff]
        %v1717 = vld [vmem:[%s1715 + $0x8] sm:$0xff]
        %1718 = vmatprep.subr.bf16.mxu0 %v844
        %1719 = vmatpush1.bf16.msra.mxu0 %v843
        %1720 = vmatprep.subr.bf16.mxu0 %v840
        %1721 = vmatpush1.bf16.msra.mxu0 %v839
        %1722 = vmatprep.subr.bf16.mxu0 %v836
        %1723 = vmatpush1.bf16.msra.mxu0 %v835
        %1724 = vmatprep.subr.bf16.mxu0 %v832
        %1725 = vmatpush1.bf16.msra.mxu0 %v831
        %1726 = vmatprep.subr.bf16.mxu0 %v828
        %1727 = vmatpush1.bf16.msra.mxu0 %v827
        %1728 = vmatprep.subr.bf16.mxu0 %v824
        %1729 = vmatpush1.bf16.msra.mxu0 %v823
        %1730 = vmatprep.subr.bf16.mxu0 %v820
        %1731 = vmatpush1.bf16.msra.mxu0 %v819
        %1732 = vmatprep.subr.bf16.mxu0 %v816
        %1733 = vmatpush1.bf16.msra.mxu0 %v815
        %1734 = vmatprep.subr.bf16.mxu0 0
        %1735 = vmatpush2.bf16.msra.mxu0 0
        %1736 = vmatprep.subr.bf16.mxu0 0
        %1737 = vmatpush2.bf16.msra.mxu0 0
        %1738 = vmatprep.subr.bf16.mxu0 0
        %1739 = vmatpush2.bf16.msra.mxu0 0
        %1740 = vmatprep.subr.bf16.mxu0 0
        %1741 = vmatpush2.bf16.msra.mxu0 0
        %1742 = vmatprep.subr.bf16.mxu0 0
        %1743 = vmatpush2.bf16.msra.mxu0 0
        %1744 = vmatprep.subr.bf16.mxu0 0
        %1745 = vmatpush2.bf16.msra.mxu0 0
        %1746 = vmatprep.subr.bf16.mxu0 0
        %1747 = vmatpush2.bf16.msra.mxu0 0
        %1748 = vmatprep.subr.bf16.mxu0 0
        %1749 = vmatpush2.bf16.msra.mxu0 0
        %1750 = vmatprep.mubr.bf16.mxu0 0
        %1751 = vmatmul.mubr.bf16.gmra.mxu0 %v1712
        %v1752 = vpop.f32.mrf.mxu0
        %v1753 = vadd.f32 0.0, %v1752
        %v1754 = vpop.f32.mrf.mxu0
        %v1755 = vadd.f32 0.0, %v1754
        %v1756 = vpop.f32.mrf.mxu0
        %v1757 = vpop.f32.mrf.mxu0
        %1758 = vdwg.mxu0
        %1759 = vmatprep.subr.bf16.mxu0 %v846
        %1760 = vmatpush1.bf16.msra.mxu0 %v845
        %1761 = vmatprep.subr.bf16.mxu0 %v842
        %1762 = vmatpush1.bf16.msra.mxu0 %v841
        %1763 = vmatprep.subr.bf16.mxu0 %v838
        %1764 = vmatpush1.bf16.msra.mxu0 %v837
        %1765 = vmatprep.subr.bf16.mxu0 %v834
        %1766 = vmatpush1.bf16.msra.mxu0 %v833
        %1767 = vmatprep.subr.bf16.mxu0 %v830
        %1768 = vmatpush1.bf16.msra.mxu0 %v829
        %1769 = vmatprep.subr.bf16.mxu0 %v826
        %1770 = vmatpush1.bf16.msra.mxu0 %v825
        %1771 = vmatprep.subr.bf16.mxu0 %v822
        %1772 = vmatpush1.bf16.msra.mxu0 %v821
        %1773 = vmatprep.subr.bf16.mxu0 %v818
        %1774 = vmatpush1.bf16.msra.mxu0 %v817
        %1775 = vmatprep.subr.bf16.mxu0 0
        %1776 = vmatpush2.bf16.msra.mxu0 0
        %1777 = vmatprep.subr.bf16.mxu0 0
        %1778 = vmatpush2.bf16.msra.mxu0 0
        %1779 = vmatprep.subr.bf16.mxu0 0
        %1780 = vmatpush2.bf16.msra.mxu0 0
        %1781 = vmatprep.subr.bf16.mxu0 0
        %1782 = vmatpush2.bf16.msra.mxu0 0
        %1783 = vmatprep.subr.bf16.mxu0 0
        %1784 = vmatpush2.bf16.msra.mxu0 0
        %1785 = vmatprep.subr.bf16.mxu0 0
        %1786 = vmatpush2.bf16.msra.mxu0 0
        %1787 = vmatprep.subr.bf16.mxu0 0
        %1788 = vmatpush2.bf16.msra.mxu0 0
        %1789 = vmatprep.subr.bf16.mxu0 0
        %1790 = vmatpush2.bf16.msra.mxu0 0
        %1791 = vmatprep.mubr.bf16.mxu0 0
        %1792 = vmatmul.mubr.bf16.gmra.mxu0 %v1712
        %v1793 = vpop.f32.mrf.mxu0
        %v1794 = vadd.f32 0.0, %v1793
        %v1795 = vpop.f32.mrf.mxu0
        %v1796 = vadd.f32 0.0, %v1795
        %v1797 = vpop.f32.mrf.mxu0
        %v1798 = vpop.f32.mrf.mxu0
        %1799 = vdwg.mxu0
        %v1800 = vunpack.c.l.bf16 %v1716
        %v1801 = vunpack.c.h.bf16 %v1716
        %v1802 = vunpack.c.l.bf16 %v1717
        %v1803 = vunpack.c.h.bf16 %v1717
        %v1804 = vadd.f32 %v1800, %v1753
        %v1805 = vadd.f32 %v1801, %v1755
        %v1806 = vadd.f32 %v1802, %v1794
        %v1807 = vadd.f32 %v1803, %v1796
        %v1808 = vxor.u32 %v1804, 2147483648
        %v1809 = vxor.u32 %v1805, 2147483648
        %v1810 = vxor.u32 %v1806, 2147483648
        %v1811 = vmul.f32 %v1808, 1.442695
        %v1812 = vpow.pop %v1811
        %v1813 = vmul.f32 %v1809, 1.442695
        %v1814 = vpow.pop %v1813
        %v1815 = vmul.f32 %v1810, 1.442695
        %v1816 = vpow.pop %v1815
        %v1817 = vadd.f32 %v1812, 1.0
        %v1818 = vadd.f32 %v1814, 1.0
        %v1819 = vadd.f32 %v1816, 1.0
        %v1820 = vrcp.pop %v1817
        %v1821 = vmul.f32 1.0, %v1820
        %v1822 = vrcp.pop %v1818
        %v1823 = vmul.f32 1.0, %v1822
        %v1824 = vrcp.pop %v1819
        %v1825 = vmul.f32 1.0, %v1824
        %v1826 = vtanh.pop %v1807
        %v1827 = vmul.f32 %v1823, %v1709
        %v1828 = vmul.f32 %v1821, %v1826
        %v1829 = vadd.f32 %v1827, %v1828
        %v1830 = vtanh.pop %v1829
        %v1831 = vmul.f32 %v1825, %v1830
        %v1832 = vpack.c.bf16 %v1831, %v1831
        %s1833 = scalar_lea.vmem [#allocation5], 28
        %1834 = vst [vmem:[%s1833] sm:$0xf] %v1832
        %1835 = vst [vmem:[#allocation2] sm:$0xff] %v1831
        %1836 = vst [vmem:[#allocation3] sm:$0xff] %v1829
        %v1837 = vld [vmem:[#allocation5] sm:$0xf]
        %v1838 = vld [vmem:[#allocation5 + $0x4] sm:$0xf]
        %v1839 = vld [vmem:[#allocation5 + $0x8] sm:$0xf]
        %v1840 = vld [vmem:[#allocation5 + $0xc] sm:$0xf]
        %v1841 = vld [vmem:[#allocation5 + $0x10] sm:$0xf]
        %v1842 = vld [vmem:[#allocation5 + $0x14] sm:$0xf]
        %v1843 = vld [vmem:[#allocation5 + $0x18] sm:$0xf]
        %v1844 = vld [vmem:[#allocation5 + $0x1c] sm:$0xf]
        %v1845 = vcombine.low %v1837, %v1841
        %v1847 = vunpack.c.l.s4 1983009808
        %v1848 = vunpack.c.0.s8 %v1847
        %v1849 = vlaneseq
        %v1850 = vshrl.u32 %v1849, 7
        %v1851 = vsub.s32 %v1848, %v1850
        %v1852 = vrot.slane %v1845, %v1851
        %v1853 = vcombine.low %v1839, %v1843
        %v1855 = vunpack.c.l.s4 1983009808
        %v1856 = vunpack.c.0.s8 %v1855
        %v1857 = vlaneseq
        %v1858 = vshrl.u32 %v1857, 7
        %v1859 = vsub.s32 %v1856, %v1858
        %v1860 = vrot.slane %v1853, %v1859
        %v1861 = vcombine.low %v1852, %v1860
        %v1862 = vcombine.high %v1852, %v1860
        %v1864 = vunpack.c.l.s4 1934713408
        %v1865 = vunpack.c.0.s8 %v1864
        %v1866 = vlaneseq
        %v1867 = vshrl.u32 %v1866, 7
        %v1868 = vsub.s32 %v1865, %v1867
        %v1869 = vrot.slane %v1861, %v1868
        %v1871 = vunpack.c.l.s4 1934713408
        %v1872 = vunpack.c.0.s8 %v1871
        %v1873 = vlaneseq
        %v1874 = vshrl.u32 %v1873, 7
        %v1875 = vsub.s32 %v1872, %v1874
        %v1876 = vrot.slane %v1862, %v1875
        %v1877 = vcombine.high %v1869, 0
        %v1878 = vcombine.high %v1876, 0
        %v1879 = vcombine.low %v1838, %v1842
        %v1881 = vunpack.c.l.s4 1983009808
        %v1882 = vunpack.c.0.s8 %v1881
        %v1883 = vlaneseq
        %v1884 = vshrl.u32 %v1883, 7
        %v1885 = vsub.s32 %v1882, %v1884
        %v1886 = vrot.slane %v1879, %v1885
        %v1887 = vcombine.low %v1840, %v1844
        %v1889 = vunpack.c.l.s4 1983009808
        %v1890 = vunpack.c.0.s8 %v1889
        %v1891 = vlaneseq
        %v1892 = vshrl.u32 %v1891, 7
        %v1893 = vsub.s32 %v1890, %v1892
        %v1894 = vrot.slane %v1887, %v1893
        %v1895 = vcombine.low %v1886, %v1894
        %v1896 = vcombine.high %v1886, %v1894
        %v1898 = vunpack.c.l.s4 1934713408
        %v1899 = vunpack.c.0.s8 %v1898
        %v1900 = vlaneseq
        %v1901 = vshrl.u32 %v1900, 7
        %v1902 = vsub.s32 %v1899, %v1901
        %v1903 = vrot.slane %v1895, %v1902
        %v1905 = vunpack.c.l.s4 1934713408
        %v1906 = vunpack.c.0.s8 %v1905
        %v1907 = vlaneseq
        %v1908 = vshrl.u32 %v1907, 7
        %v1909 = vsub.s32 %v1906, %v1908
        %v1910 = vrot.slane %v1896, %v1909
        %v1911 = vcombine.high %v1903, 0
        %v1912 = vcombine.high %v1910, 0
        %v1915 = vpack.i.b16 %v1903, %v1869
        %v1916 = vshrl.u32 %v1869, 16
        %v1917 = vshrl.u32 %v1903, 16
        %v1918 = vpack.i.b16 %v1917, %v1916
        %v1921 = vpack.i.b16 %v1911, %v1877
        %v1922 = vshrl.u32 %v1877, 16
        %v1923 = vshrl.u32 %v1911, 16
        %v1924 = vpack.i.b16 %v1923, %v1922
        %v1927 = vpack.i.b16 %v1910, %v1876
        %v1928 = vshrl.u32 %v1876, 16
        %v1929 = vshrl.u32 %v1910, 16
        %v1930 = vpack.i.b16 %v1929, %v1928
        %v1933 = vpack.i.b16 %v1912, %v1878
        %v1934 = vshrl.u32 %v1878, 16
        %v1935 = vshrl.u32 %v1912, 16
        %v1936 = vpack.i.b16 %v1935, %v1934
        %v1937 = vld [vmem:[%s4] sm:$0xf]
        %v1938 = vld [vmem:[%s4 + $0x4] sm:$0xf]
        %v1939 = vld [vmem:[%s4 + $0x8] sm:$0xf]
        %v1940 = vld [vmem:[%s4 + $0xc] sm:$0xf]
        %v1941 = vld [vmem:[%s4 + $0x10] sm:$0xf]
        %v1942 = vld [vmem:[%s4 + $0x14] sm:$0xf]
        %v1943 = vld [vmem:[%s4 + $0x18] sm:$0xf]
        %v1944 = vld [vmem:[%s4 + $0x1c] sm:$0xf]
        %v1945 = vld [vmem:[%s4 + $0x20] sm:$0xf]
        %v1946 = vld [vmem:[%s4 + $0x24] sm:$0xf]
        %v1947 = vld [vmem:[%s4 + $0x28] sm:$0xf]
        %v1948 = vld [vmem:[%s4 + $0x2c] sm:$0xf]
        %v1949 = vld [vmem:[%s4 + $0x30] sm:$0xf]
        %v1950 = vld [vmem:[%s4 + $0x34] sm:$0xf]
        %v1951 = vld [vmem:[%s4 + $0x38] sm:$0xf]
        %v1952 = vld [vmem:[%s4 + $0x3c] sm:$0xf]
        %v1953 = vld [vmem:[%s5] sm:$0x1]
        %v1955 = vlaneseq
        %v1956 = vshrl.u32 %v1955, 7
        %v1957 = vsub.s32 0, %v1956
        %v1958 = vrot.slane %v1953, %v1957
        %v1960 = vunpack.c.l.b16 %v1915
        %v1961 = vunpack.c.l.b16 %v1918
        %v1962 = vunpack.c.l.b16 %v1921
        %v1963 = vunpack.c.l.b16 %v1924
        %v1964 = vunpack.c.l.b16 %v1927
        %v1965 = vunpack.c.l.b16 %v1930
        %v1966 = vunpack.c.l.b16 %v1933
        %v1967 = vunpack.c.l.b16 %v1936
        %v1968 = vpack.c.b16 %v1961, %v1960
        %v1969 = vpack.c.b16 %v1963, %v1962
        %v1970 = vpack.c.b16 %v1965, %v1964
        %v1971 = vpack.c.b16 %v1967, %v1966
        %v1992 = vunpack.c.l.b16 %v1937
        %v1993 = vunpack.c.l.b16 %v1938
        %v1994 = vunpack.c.l.b16 %v1939
        %v1995 = vunpack.c.l.b16 %v1940
        %v1996 = vunpack.c.l.b16 %v1941
        %v1997 = vunpack.c.l.b16 %v1942
        %v1998 = vunpack.c.l.b16 %v1943
        %v1999 = vunpack.c.l.b16 %v1944
        %v2000 = vunpack.c.l.b16 %v1945
        %v2001 = vunpack.c.l.b16 %v1946
        %v2002 = vunpack.c.l.b16 %v1947
        %v2003 = vunpack.c.l.b16 %v1948
        %v2004 = vunpack.c.l.b16 %v1949
        %v2005 = vunpack.c.l.b16 %v1950
        %v2006 = vunpack.c.l.b16 %v1951
        %v2007 = vunpack.c.l.b16 %v1952
        %v2008 = vpack.c.b16 %v1993, %v1992
        %v2009 = vpack.c.b16 %v1995, %v1994
        %v2010 = vpack.c.b16 %v1997, %v1996
        %v2011 = vpack.c.b16 %v1999, %v1998
        %v2012 = vpack.c.b16 %v2001, %v2000
        %v2013 = vpack.c.b16 %v2003, %v2002
        %v2014 = vpack.c.b16 %v2005, %v2004
        %v2015 = vpack.c.b16 %v2007, %v2006
        %2024 = vmatprep.subr.bf16.mxu0 0
        %2025 = vmatpush1.bf16.msra.mxu0 %v2015
        %2026 = vmatprep.subr.bf16.mxu0 0
        %2027 = vmatpush1.bf16.msra.mxu0 %v2014
        %2028 = vmatprep.subr.bf16.mxu0 0
        %2029 = vmatpush1.bf16.msra.mxu0 %v2013
        %2030 = vmatprep.subr.bf16.mxu0 0
        %2031 = vmatpush1.bf16.msra.mxu0 %v2012
        %2032 = vmatprep.subr.bf16.mxu0 0
        %2033 = vmatpush1.bf16.msra.mxu0 %v2011
        %2034 = vmatprep.subr.bf16.mxu0 0
        %2035 = vmatpush1.bf16.msra.mxu0 %v2010
        %2036 = vmatprep.subr.bf16.mxu0 0
        %2037 = vmatpush1.bf16.msra.mxu0 %v2009
        %2038 = vmatprep.subr.bf16.mxu0 0
        %2039 = vmatpush1.bf16.msra.mxu0 %v2008
        %2040 = vmatprep.subr.bf16.mxu0 0
        %2041 = vmatpush2.bf16.msra.mxu0 0
        %2042 = vmatprep.subr.bf16.mxu0 0
        %2043 = vmatpush2.bf16.msra.mxu0 0
        %2044 = vmatprep.subr.bf16.mxu0 0
        %2045 = vmatpush2.bf16.msra.mxu0 0
        %2046 = vmatprep.subr.bf16.mxu0 0
        %2047 = vmatpush2.bf16.msra.mxu0 0
        %2048 = vmatprep.subr.bf16.mxu0 0
        %2049 = vmatpush2.bf16.msra.mxu0 0
        %2050 = vmatprep.subr.bf16.mxu0 0
        %2051 = vmatpush2.bf16.msra.mxu0 0
        %2052 = vmatprep.subr.bf16.mxu0 0
        %2053 = vmatpush2.bf16.msra.mxu0 0
        %2054 = vmatprep.subr.bf16.mxu0 0
        %2055 = vmatpush2.bf16.msra.mxu0 0
        %2056 = vmatprep.mubr.bf16.mxu0 0
        %2057 = vmatmul.mubr.bf16.gmra.mxu0 %v1968
        %v2058 = vpop.f32.mrf.mxu0
        %v2059 = vadd.f32 %v1958, %v2058
        %v2060 = vpop.f32.mrf.mxu0
        %v2061 = vpop.f32.mrf.mxu0
        %v2062 = vadd.f32 %v1958, %v2061
        %v2063 = vpop.f32.mrf.mxu0
        %2064 = vmatprep.mubr.bf16.mxu0 0
        %2065 = vmatmul.mubr.bf16.gmra.mxu0 %v1969
        %v2066 = vpop.f32.mrf.mxu0
        %v2067 = vadd.f32 %v1958, %v2066
        %v2068 = vpop.f32.mrf.mxu0
        %v2069 = vpop.f32.mrf.mxu0
        %v2070 = vadd.f32 %v1958, %v2069
        %v2071 = vpop.f32.mrf.mxu0
        %2072 = vmatprep.mubr.bf16.mxu0 0
        %2073 = vmatmul.mubr.bf16.gmra.mxu0 %v1970
        %v2074 = vpop.f32.mrf.mxu0
        %v2075 = vadd.f32 %v1958, %v2074
        %v2076 = vpop.f32.mrf.mxu0
        %v2077 = vpop.f32.mrf.mxu0
        %v2078 = vadd.f32 %v1958, %v2077
        %v2079 = vpop.f32.mrf.mxu0
        %2080 = vmatprep.mubr.bf16.mxu0 0
        %2081 = vmatmul.mubr.bf16.gmra.mxu0 %v1971
        %v2082 = vpop.f32.mrf.mxu0
        %v2083 = vadd.f32 %v1958, %v2082
        %v2084 = vpop.f32.mrf.mxu0
        %v2085 = vpop.f32.mrf.mxu0
        %v2086 = vadd.f32 %v1958, %v2085
        %v2087 = vpop.f32.mrf.mxu0
        %2088 = vdwg.mxu0
        %2089 = vst [vmem:[%s263] sm:$0xff] %v2059
        %2090 = vst [vmem:[%s263 + $0x8] sm:$0xff] %v2062
        %2091 = vst [vmem:[%s263 + $0x10] sm:$0xff] %v2067
        %2092 = vst [vmem:[%s263 + $0x18] sm:$0xff] %v2070
        %2093 = vst [vmem:[%s263 + $0x20] sm:$0xff] %v2075
        %2094 = vst [vmem:[%s263 + $0x28] sm:$0xff] %v2078
        %2095 = vst [vmem:[%s263 + $0x30] sm:$0xff] %v2083
        %2096 = vst [vmem:[%s263 + $0x38] sm:$0xff] %v2086
        %s2097 = sand.u32 %s172, 1
        %s2098 = sand.u32 %s172, 1
        %s2099 = smul.addr %s2098, 64
        %s2100 = scalar_lea.vmem [#allocation6], %s2099
        // Predicated region
        $region49: #{rnn_forward.1} parent=43 // pred_check
          %p2101 = pneg %p182
        $region50: #{rnn_forward.1} parent=43 // pred_check_branch
          %2103 = sbr.rel (%p2101) target = $region52
        $region51: #{rnn_forward.1} parent=43 // pred_region
          %s2104 = smul.u32 8, %s21
          %s2105 = smul.addr %s2104, 2
          %s2106 = sadd.s32 %s22, %s2105
          %s2107 = smul.addr %s2106, 8
          %s2108 = scalar_lea.vmem %s6, %s2107
          // Predicated region
          $region53: #{rnn_forward.1} parent=51 // pred_check
            _
          $region54: #{rnn_forward.1} parent=51 // pred_check_branch
            %2110 = sbr.rel (0) target = $region56
          $region55: #{rnn_forward.1} parent=51 // pred_region
            // Predicated region
            $region57: #{rnn_forward.1} parent=55 // pred_check
              _
            $region58: #{rnn_forward.1} parent=55 // pred_check_branch
              %2112 = sbr.rel (0) target = $region60
            $region59: #{rnn_forward.1} parent=55 // pred_region
              // Predicated region
              $region72: #{rnn_forward.1} parent=59 // pred_check
                _
              $region73: #{rnn_forward.1} parent=59 // pred_check_branch
                %2142 = sbr.rel (0) target = $region75
              $region74: #{rnn_forward.1} parent=59 // pred_region
                loop: start=0, step=1, limit=1
                $region76: #{rnn_forward.1} parent=74 // loop_pre_header
                  _
                $region77: #{rnn_forward.1} parent=74 // loop_header
                  %s2144 = sphi 0, %s2148
                  %p2145 = scmp.ge.s32.totalorder %s2144, 1
                  %s2149 = sphi %s2100, %s2100
                  %s2150 = sphi %s2108, %s2108
                $region78: #{rnn_forward.1} parent=74 // loop_header_branch
                  %2147 = sbr.rel (%p2145) target = $region82
                $region79: #{rnn_forward.1} parent=74 // loop_body
                  %v2151 = vld [vmem:[%s2149] sm:$0xff]
                  %2152 = vst [vmem:[%s2150] sm:$0xff] %v2151
                  %v2153 = vld [vmem:[%s2149 + $0x8] sm:$0xff]
                  %2154 = vst [vmem:[%s2150 + $0x10] sm:$0xff] %v2153
                  %v2155 = vld [vmem:[%s2149 + $0x10] sm:$0xff]
                  %2156 = vst [vmem:[%s2150 + $0x20] sm:$0xff] %v2155
                  %v2157 = vld [vmem:[%s2149 + $0x18] sm:$0xff]
                  %2158 = vst [vmem:[%s2150 + $0x30] sm:$0xff] %v2157
                  %v2159 = vld [vmem:[%s2149 + $0x20] sm:$0xff]
                  %2160 = vst [vmem:[%s2150 + $0x40] sm:$0xff] %v2159
                  %v2161 = vld [vmem:[%s2149 + $0x28] sm:$0xff]
                  %2162 = vst [vmem:[%s2150 + $0x50] sm:$0xff] %v2161
                  %v2163 = vld [vmem:[%s2149 + $0x30] sm:$0xff]
                  %2164 = vst [vmem:[%s2150 + $0x60] sm:$0xff] %v2163
                  %v2165 = vld [vmem:[%s2149 + $0x38] sm:$0xff]
                  %2166 = vst [vmem:[%s2150 + $0x70] sm:$0xff] %v2165
                $region80: #{rnn_forward.1} parent=74 // loop_footer
                  %s2148 = sadd.s32 1, %s2144
                $region81: #{rnn_forward.1} parent=74 // loop_footer_branch
                  %2143 = sbr.rel target = $region77
                $region82: #{rnn_forward.1} parent=74 // loop_exit
                  _
              $region75: #{rnn_forward.1} parent=59 // pred_fallthru
                _
              // Predicated region
              $region83: #{rnn_forward.1} parent=59 // pred_check
                _
              $region84: #{rnn_forward.1} parent=59 // pred_check_branch
                %2168 = sbr.rel target = $region86
              $region85: #{rnn_forward.1} parent=59 // pred_region
                _
              $region86: #{rnn_forward.1} parent=59 // pred_fallthru
                _
            $region60: #{rnn_forward.1} parent=55 // pred_fallthru
              _
            // Predicated region
            $region61: #{rnn_forward.1} parent=55 // pred_check
              _
            $region62: #{rnn_forward.1} parent=55 // pred_check_branch
              %2114 = sbr.rel target = $region64
            $region63: #{rnn_forward.1} parent=55 // pred_region
              %s2116 = ssub.s32 256, 1
              loop: start=0, step=1, limit=1
              $region65: #{rnn_forward.1} parent=63 // loop_pre_header
                _
              $region66: #{rnn_forward.1} parent=63 // loop_header
                %s2118 = sphi 0, %s2122
                %p2119 = scmp.ge.s32.totalorder %s2118, 1
                %s2123 = sphi %s2100, %s2100
                %s2124 = sphi %s2108, %s2108
              $region67: #{rnn_forward.1} parent=63 // loop_header_branch
                %2121 = sbr.rel (%p2119) target = $region71
              $region68: #{rnn_forward.1} parent=63 // loop_body
                %v2125 = vld [vmem:[%s2123] sm:%s2116]
                %2126 = vst [vmem:[%s2124] sm:%s2116] %v2125
                %v2127 = vld [vmem:[%s2123 + $0x8] sm:%s2116]
                %2128 = vst [vmem:[%s2124 + $0x10] sm:%s2116] %v2127
                %v2129 = vld [vmem:[%s2123 + $0x10] sm:%s2116]
                %2130 = vst [vmem:[%s2124 + $0x20] sm:%s2116] %v2129
                %v2131 = vld [vmem:[%s2123 + $0x18] sm:%s2116]
                %2132 = vst [vmem:[%s2124 + $0x30] sm:%s2116] %v2131
                %v2133 = vld [vmem:[%s2123 + $0x20] sm:%s2116]
                %2134 = vst [vmem:[%s2124 + $0x40] sm:%s2116] %v2133
                %v2135 = vld [vmem:[%s2123 + $0x28] sm:%s2116]
                %2136 = vst [vmem:[%s2124 + $0x50] sm:%s2116] %v2135
                %v2137 = vld [vmem:[%s2123 + $0x30] sm:%s2116]
                %2138 = vst [vmem:[%s2124 + $0x60] sm:%s2116] %v2137
                %v2139 = vld [vmem:[%s2123 + $0x38] sm:%s2116]
                %2140 = vst [vmem:[%s2124 + $0x70] sm:%s2116] %v2139
              $region69: #{rnn_forward.1} parent=63 // loop_footer
                %s2122 = sadd.s32 1, %s2118
              $region70: #{rnn_forward.1} parent=63 // loop_footer_branch
                %2117 = sbr.rel target = $region66
              $region71: #{rnn_forward.1} parent=63 // loop_exit
                _
            $region64: #{rnn_forward.1} parent=55 // pred_fallthru
              _
          $region56: #{rnn_forward.1} parent=51 // pred_fallthru
            _
          %2169 = vnop
        $region52: #{rnn_forward.1} parent=43 // pred_fallthru
          _
      $region44: #{rnn_forward.1} parent=5 // pred_fallthru
        _
      %p2170 = scmp.le.s32.totalorder 2, %s12
      // Predicated region
      $region87: #{rnn_forward.1} parent=5 // pred_check
        %p2171 = pneg %p2170
      $region88: #{rnn_forward.1} parent=5 // pred_check_branch
        %2173 = sbr.rel (%p2171) target = $region90
      $region89: #{rnn_forward.1} parent=5 // pred_region
        %s2174 = ssub.s32 %s12, 2
        // Predicated region
        $region91: #{rnn_forward.1} parent=89 // pred_check
          %p2175 = pneg %p188
        $region92: #{rnn_forward.1} parent=89 // pred_check_branch
          %2177 = sbr.rel (%p2175) target = $region94
        $region93: #{rnn_forward.1} parent=89 // pred_region
          %s2178 = sand.u32 %s173, 1
          %s2179 = sand.u32 %s173, 1
          %s2180 = smul.addr %s2179, 64
          %s2181 = scalar_lea.vmem [#allocation6], %s2180
        $region94: #{rnn_forward.1} parent=89 // pred_fallthru
          _
      $region90: #{rnn_forward.1} parent=5 // pred_fallthru
        _
    $region6: #{rnn_forward.1} parent=1 // loop_footer
      %s16 = sadd.s32 1, %s12
    $region7: #{rnn_forward.1} parent=1 // loop_footer_branch
      %11 = sbr.rel target = $region3
    $region8: #{rnn_forward.1} parent=1 // loop_exit
      _

</llo_original>
